<compile_context>
chip_gen: v6e
topology: v6e:2x2x1
jax: 0.10.0
libtpu: 0.0.40
codegen_flags: <defaults>
</compile_context>

<pallas_src>
import functools
from typing import NamedTuple, Tuple

import jax
import jax.numpy as jnp
from jax.experimental import pallas as pl
from jax.experimental.pallas import tpu as pltpu

_LANE = 128
_SUBLANE_BF16 = 16   # bf16 packs 16 rows per vreg sublane group
_NUM_SUBTILES = 2    # independent M sub-tiles interleaved inside the kernel


def _round_up(x, m):
    return ((x + m - 1) // m) * m


def _enn_kernel(num_layers, num_subtiles, x_ref, *refs):
    """One batch tile: full layer stack + logits + sigmoid.

    refs = (w_0, ..., w_{L-1}, w_logits, out_ref). Weights are bf16 and
    pre-transposed (in_features, out_features); activations stay f32 between
    matmuls and are cast to bf16 only at each MXU input.
    """
    w_refs = refs[:num_layers]
    wl_ref = refs[num_layers]
    out_ref = refs[num_layers + 1]

    tm = x_ref.shape[0]
    sub = tm // num_subtiles

    # Independent M sub-tiles: per-layer dots for all sub-tiles are issued
    # back-to-back (independent), so the MXU stays busy while the VPU handles
    # the other sub-tile's ReLU / cast / skip-add.
    outs = [x_ref[pl.ds(s * sub, sub), :] for s in range(num_subtiles)]  # bf16
    outs_f32 = [None] * num_subtiles
    ys = [None] * num_subtiles  # f32 skip carries (kept f32 for accuracy)

    for i in range(num_layers):
        if i % 2 == 1:
            ys = list(outs_f32)
        w = w_refs[i][...]
        accs = [
            jnp.dot(outs[s], w, preferred_element_type=jnp.float32)
            for s in range(num_subtiles)
        ]
        if i % 2 == 0 and i > 0:
            accs = [a + y for a, y in zip(accs, ys)]
        outs_f32 = [jnp.maximum(a, 0.0) for a in accs]   # ReLU on the VPU
        outs = [o.astype(jnp.bfloat16) for o in outs_f32]

    wl = wl_ref[...]
    for s in range(num_subtiles):
        logits = jnp.dot(outs[s], wl, preferred_element_type=jnp.float32)
        # sigmoid = 1/(1+exp(-x)): exp on the EUP, approx EUP reciprocal.
        sig = pl.reciprocal(1.0 + jnp.exp(-logits), approx=True)
        out_ref[pl.ds(s * sub, sub), :] = sig.astype(out_ref.dtype)


class ENNParams(NamedTuple):
    ws: Tuple[jnp.ndarray, ...]   # padded bf16 (in_pad, out_pad) per layer
    wl: jnp.ndarray               # padded bf16 (in_pad, c_pad)
    flat_dim: int
    num_classes: int


def prepare_enn_params(weights, w_logits):
    """Pad feature dims to lane multiples + cast to bf16, ONCE (hoisted out
    of the forward path so every call does no weight reformatting)."""
    num_layers = len(weights)
    flat_dim = weights[0].shape[0]
    num_classes = w_logits.shape[1]

    # Skip connection requires out-width(layer j) == width of y (== in-width
    # of layer j-1's output) for every even j > 0; mirrors the PyTorch model.
    for j in range(2, num_layers, 2):
        assert weights[j].shape[1] == weights[j - 1].shape[0], (
            "skip connection width mismatch between layers "
            f"{j} and {j - 1}"
        )

    ws = []
    cur, cur_pad = flat_dim, _round_up(flat_dim, _LANE)
    for w in weights:
        rows, cols = w.shape
        assert rows == cur, "weight shape mismatch with activation dim"
        cols_pad = _round_up(cols, _LANE)
        # NOTE: lane padding stays at 128; padding hidden widths to 256 would
        # not speed up the 256-wide MXU (same pushes, 4x data) for 128-wide
        # layers — they are MXU-shape-bound on v6e/v7x, native on v5e.
        wp = jnp.pad(w, ((0, cur_pad - rows), (0, cols_pad - cols)))
        ws.append(wp.astype(jnp.bfloat16))
        cur, cur_pad = cols, cols_pad
    assert w_logits.shape[0] == cur
    c_pad = _round_up(num_classes, _LANE)
    wl = jnp.pad(
        w_logits, ((0, cur_pad - cur), (0, c_pad - num_classes))
    ).astype(jnp.bfloat16)
    return ENNParams(tuple(ws), wl, flat_dim, num_classes)


def enn_forward(x, params: ENNParams, *, tm=256):
    """x: (B, ...) any trailing dims. Returns (B, num_classes) f32."""
    B = x.shape[0]
    x_flat = x.reshape(B, -1)
    assert x_flat.shape[1] == params.flat_dim, "input flat dim mismatch"

    ws, wl = params.ws, params.wl
    num_layers = len(ws)
    f_pad = ws[0].shape[0]
    c_pad = wl.shape[1]
    num_classes = params.num_classes

    # ---- batch tiling: 16-sublane aligned (bf16 packing), split into
    # _NUM_SUBTILES inside the kernel, capped so the grid has >= 2 steps so
    # the "parallel" axis can be split across v7x's two TensorCores. ----
    m_align = _SUBLANE_BF16 * _NUM_SUBTILES
    b_round = _round_up(B, m_align)
    tm_cap = max(m_align, _round_up(pl.cdiv(b_round, 2), m_align))
    tm_eff = min(_round_up(tm, m_align), b_round, tm_cap)
    b_pad = _round_up(B, tm_eff)
    grid = (b_pad // tm_eff,)

    # One cast + one pad (no f32 round-trip); zero rows/cols are inert.
    x_p = jnp.pad(
        x_flat.astype(jnp.bfloat16),
        ((0, b_pad - B), (0, f_pad - x_flat.shape[1])),
    )

    # ---- VMEM footprint (weights resident x buffer count, double-buffered
    # activation/output tiles, f32 intermediates) ----
    weight_bytes = sum(int(w.size) * 2 for w in ws) + int(wl.size) * 2
    act_bytes = 2 * tm_eff * f_pad * 2        # double-buffered bf16 input tile
    out_bytes = 2 * tm_eff * c_pad * 4        # double-buffered f32 output tile
    max_w = max([f_pad, c_pad] + [int(w.shape[1]) for w in ws])
    interm_bytes = 6 * tm_eff * max_w * 4     # f32 activations / skip carries
    # TODO(synk): if weight_bytes exceeds ~40 MiB (v7x 64 MiB VMEM budget),
    # switch to a pipelined-weights path (extra grid axis / emit_pipeline)
    # instead of keeping every layer resident.

    # ---- cost estimate so XLA schedules surrounding ops around the call ----
    flops = 0
    prev = f_pad
    for w in ws:
        flops += 2 * b_pad * prev * int(w.shape[1])
        prev = int(w.shape[1])
    flops += 2 * b_pad * prev * c_pad
    cost = pl.CostEstimate(
        flops=flops,
        transcendentals=b_pad * c_pad,
        bytes_accessed=int(x_p.size) * 2 + weight_bytes + b_pad * c_pad * 4,
    )

    out_shape = jax.ShapeDtypeStruct((b_pad, c_pad), jnp.float32)
    kernel = functools.partial(_enn_kernel, num_layers, _NUM_SUBTILES)

    def build(single_buffer_weights):
        in_specs = [pl.BlockSpec((tm_eff, f_pad), lambda i: (i, 0))]
        for w in list(ws) + [wl]:
            spec = None
            if single_buffer_weights:
                try:
                    # Constant index map -> never re-fetched across the grid;
                    # single-buffer it so it occupies 1x VMEM, not 2x.
                    spec = pl.BlockSpec(
                        w.shape, lambda i: (0, 0),
                        pipeline_mode=pl.Buffered(1),
                    )
                except (AttributeError, TypeError):
                    spec = None
            if spec is None:
                spec = pl.BlockSpec(w.shape, lambda i: (0, 0))
            in_specs.append(spec)
        wbuf = 1 if single_buffer_weights else 2
        vmem_need = weight_bytes * wbuf + act_bytes + out_bytes + interm_bytes
        vmem_limit = min(max(2 * vmem_need + (2 << 20), 8 << 20), 48 << 20)
        return pl.pallas_call(
            kernel,
            out_shape=out_shape,
            grid=grid,
            in_specs=in_specs,
            out_specs=pl.BlockSpec((tm_eff, c_pad), lambda i: (i, 0)),
            compiler_params=pltpu.CompilerParams(
                dimension_semantics=("parallel",),   # megacore split on v7x
                vmem_limit_bytes=vmem_limit,
            ),
            cost_estimate=cost,
        )

    try:
        out_pad = jax.block_until_ready(build(True)(x_p, *ws, wl))
    except Exception:
        # Fallback for jax/Mosaic versions that reject single-buffered
        # (Buffered(1)) weight specs in the main pipeline.
        out_pad = build(False)(x_p, *ws, wl)

    return out_pad[:B, :num_classes]


def _reference_forward(x, weights, w_logits):
    """Pure-JAX f32 reference matching the PyTorch forward exactly."""
    B = x.shape[0]
    out = x.reshape(B, -1).astype(jnp.float32)
    y = None
    for i, w in enumerate(weights):
        if i % 2 == 1:
            y = out
        out = out @ w
        if i % 2 == 0 and i > 0:
            out = out + y
        out = jnp.maximum(out, 0.0)
    out = out @ w_logits
    return jax.nn.sigmoid(out)


def _init_params(key, flat_dim, num_filters, num_layers, num_classes):
    """Kaiming-uniform-ish init (like nn.Linear default), stored transposed
    as (in_features, out_features), f32."""
    weights = []
    in_dim = flat_dim
    for _ in range(num_layers):
        key, sub = jax.random.split(key)
        bound = 1.0 / jnp.sqrt(in_dim)
        w = jax.random.uniform(
            sub, (in_dim, num_filters), jnp.float32, -bound, bound
        )
        weights.append(w)
        in_dim = num_filters
    key, sub = jax.random.split(key)
    bound = 1.0 / jnp.sqrt(in_dim)
    w_logits = jax.random.uniform(
        sub, (in_dim, num_classes), jnp.float32, -bound, bound
    )
    return weights, w_logits


if __name__ == "__main__":
    # Shapes consistent with the module: input_shape=(B,4,8,8) -> flat 256,
    # num_filters=128, num_layers=3 (exercises the skip connection),
    # num_output_classes=10, use_bias=False (module default).
    # B=64 keeps the demo small while still exercising a 2-step batch grid
    # (megacore-splittable) with VMEM-resident weights and 2 M sub-tiles.
    B, C, H, W = 64, 4, 8, 8
    num_filters = 128
    num_layers = 3
    num_classes = 10

    key = jax.random.PRNGKey(0)
    key, xk = jax.random.split(key)
    x = jax.random.normal(xk, (B, C, H, W), jnp.float32)

    weights, w_logits = _init_params(
        key, C * H * W, num_filters, num_layers, num_classes
    )

    params = prepare_enn_params(weights, w_logits)   # pad + bf16 cast, once
    out = enn_forward(x, params, tm=256)
    out = jax.block_until_ready(out)

    ref = _reference_forward(x, weights, w_logits)
    assert out.shape == (B, num_classes)
    # bf16 matmul inputs (f32 accumulate) + approx reciprocal -> loosened tol.
    assert jnp.allclose(out, ref, atol=2e-2, rtol=0.0), (
        "mismatch vs reference: max abs diff "
        f"{float(jnp.max(jnp.abs(out - ref)))}"
    )

    print("KERNEL_OK")
</pallas_src>

<mosaic_0001>
module attributes {stable_mosaic.version = 11 : i64} {
  func.func @_enn_kernel(%arg0: i32, %arg1: memref<32x256xbf16, #tpu.memory_space<vmem>>, %arg2: memref<256x128xbf16, #tpu.memory_space<vmem>>, %arg3: memref<128x128xbf16, #tpu.memory_space<vmem>>, %arg4: memref<128x128xbf16, #tpu.memory_space<vmem>>, %arg5: memref<128x128xbf16, #tpu.memory_space<vmem>>, %arg6: memref<32x128xf32, #tpu.memory_space<vmem>>) attributes {dimension_semantics = [#tpu.dimension_semantics<parallel>], iteration_bounds = array<i64: 2>, scalar_prefetch = 0 : i64, scratch_operands = 0 : i64, tpu.core_type = #tpu.core_type<tc>, window_params = [{transform_indices = @transform_0, window_bounds = array<i64: 32, 256>}, {pipeline_mode = #tpu.pipeline_mode<synchronous>, transform_indices = @transform_1, window_bounds = array<i64: 256, 128>}, {pipeline_mode = #tpu.pipeline_mode<synchronous>, transform_indices = @transform_2, window_bounds = array<i64: 128, 128>}, {pipeline_mode = #tpu.pipeline_mode<synchronous>, transform_indices = @transform_3, window_bounds = array<i64: 128, 128>}, {pipeline_mode = #tpu.pipeline_mode<synchronous>, transform_indices = @transform_4, window_bounds = array<i64: 128, 128>}, {transform_indices = @transform_5, window_bounds = array<i64: 32, 128>}]} {
    %c0 = arith.constant 0 : index
    %c0_0 = arith.constant 0 : index
    %0 = vector.load %arg1[%c0, %c0_0] : memref<32x256xbf16, #tpu.memory_space<vmem>>, vector<16x256xbf16>
    %c16 = arith.constant 16 : index
    %c0_1 = arith.constant 0 : index
    %1 = vector.load %arg1[%c16, %c0_1] : memref<32x256xbf16, #tpu.memory_space<vmem>>, vector<16x256xbf16>
    %c0_2 = arith.constant 0 : index
    %c0_3 = arith.constant 0 : index
    %2 = vector.load %arg2[%c0_2, %c0_3] : memref<256x128xbf16, #tpu.memory_space<vmem>>, vector<256x128xbf16>
    %cst = arith.constant dense<0.000000e+00> : vector<16x128xf32>
    %3 = tpu.matmul %0, %2, %cst {dimension_numbers = #tpu.dot_dimension_numbers<[1], [0], [0], [1], [0, 0, 1, 1], [], []>} : vector<16x256xbf16>, vector<256x128xbf16>, vector<16x128xf32> -> vector<16x128xf32>
    %cst_4 = arith.constant dense<0.000000e+00> : vector<16x128xf32>
    %4 = tpu.matmul %1, %2, %cst_4 {dimension_numbers = #tpu.dot_dimension_numbers<[1], [0], [0], [1], [0, 0, 1, 1], [], []>} : vector<16x256xbf16>, vector<256x128xbf16>, vector<16x128xf32> -> vector<16x128xf32>
    %cst_5 = arith.constant 0.000000e+00 : f32
    %5 = vector.broadcast %cst_5 : f32 to vector<16x128xf32>
    %6 = arith.maximumf %3, %5 : vector<16x128xf32>
    %cst_6 = arith.constant 0.000000e+00 : f32
    %7 = vector.broadcast %cst_6 : f32 to vector<16x128xf32>
    %8 = arith.maximumf %4, %7 : vector<16x128xf32>
    %9 = arith.truncf %6 : vector<16x128xf32> to vector<16x128xbf16>
    %10 = arith.truncf %8 : vector<16x128xf32> to vector<16x128xbf16>
    %c0_7 = arith.constant 0 : index
    %c0_8 = arith.constant 0 : index
    %11 = vector.load %arg3[%c0_7, %c0_8] : memref<128x128xbf16, #tpu.memory_space<vmem>>, vector<128x128xbf16>
    %cst_9 = arith.constant dense<0.000000e+00> : vector<16x128xf32>
    %12 = tpu.matmul %9, %11, %cst_9 {dimension_numbers = #tpu.dot_dimension_numbers<[1], [0], [0], [1], [0, 0, 1, 1], [], []>} : vector<16x128xbf16>, vector<128x128xbf16>, vector<16x128xf32> -> vector<16x128xf32>
    %cst_10 = arith.constant dense<0.000000e+00> : vector<16x128xf32>
    %13 = tpu.matmul %10, %11, %cst_10 {dimension_numbers = #tpu.dot_dimension_numbers<[1], [0], [0], [1], [0, 0, 1, 1], [], []>} : vector<16x128xbf16>, vector<128x128xbf16>, vector<16x128xf32> -> vector<16x128xf32>
    %cst_11 = arith.constant 0.000000e+00 : f32
    %14 = vector.broadcast %cst_11 : f32 to vector<16x128xf32>
    %15 = arith.maximumf %12, %14 : vector<16x128xf32>
    %cst_12 = arith.constant 0.000000e+00 : f32
    %16 = vector.broadcast %cst_12 : f32 to vector<16x128xf32>
    %17 = arith.maximumf %13, %16 : vector<16x128xf32>
    %18 = arith.truncf %15 : vector<16x128xf32> to vector<16x128xbf16>
    %19 = arith.truncf %17 : vector<16x128xf32> to vector<16x128xbf16>
    %c0_13 = arith.constant 0 : index
    %c0_14 = arith.constant 0 : index
    %20 = vector.load %arg4[%c0_13, %c0_14] : memref<128x128xbf16, #tpu.memory_space<vmem>>, vector<128x128xbf16>
    %cst_15 = arith.constant dense<0.000000e+00> : vector<16x128xf32>
    %21 = tpu.matmul %18, %20, %cst_15 {dimension_numbers = #tpu.dot_dimension_numbers<[1], [0], [0], [1], [0, 0, 1, 1], [], []>} : vector<16x128xbf16>, vector<128x128xbf16>, vector<16x128xf32> -> vector<16x128xf32>
    %cst_16 = arith.constant dense<0.000000e+00> : vector<16x128xf32>
    %22 = tpu.matmul %19, %20, %cst_16 {dimension_numbers = #tpu.dot_dimension_numbers<[1], [0], [0], [1], [0, 0, 1, 1], [], []>} : vector<16x128xbf16>, vector<128x128xbf16>, vector<16x128xf32> -> vector<16x128xf32>
    %23 = arith.addf %21, %6 : vector<16x128xf32>
    %24 = arith.addf %22, %8 : vector<16x128xf32>
    %cst_17 = arith.constant 0.000000e+00 : f32
    %25 = vector.broadcast %cst_17 : f32 to vector<16x128xf32>
    %26 = arith.maximumf %23, %25 : vector<16x128xf32>
    %cst_18 = arith.constant 0.000000e+00 : f32
    %27 = vector.broadcast %cst_18 : f32 to vector<16x128xf32>
    %28 = arith.maximumf %24, %27 : vector<16x128xf32>
    %29 = arith.truncf %26 : vector<16x128xf32> to vector<16x128xbf16>
    %30 = arith.truncf %28 : vector<16x128xf32> to vector<16x128xbf16>
    %c0_19 = arith.constant 0 : index
    %c0_20 = arith.constant 0 : index
    %31 = vector.load %arg5[%c0_19, %c0_20] : memref<128x128xbf16, #tpu.memory_space<vmem>>, vector<128x128xbf16>
    %cst_21 = arith.constant dense<0.000000e+00> : vector<16x128xf32>
    %32 = tpu.matmul %29, %31, %cst_21 {dimension_numbers = #tpu.dot_dimension_numbers<[1], [0], [0], [1], [0, 0, 1, 1], [], []>} : vector<16x128xbf16>, vector<128x128xbf16>, vector<16x128xf32> -> vector<16x128xf32>
    %cst_22 = arith.constant 0.000000e+00 : f32
    %33 = vector.broadcast %cst_22 : f32 to vector<16x128xf32>
    %34 = arith.subf %33, %32 : vector<16x128xf32>
    %35 = math.exp %34 : vector<16x128xf32>
    %cst_23 = arith.constant 1.000000e+00 : f32
    %36 = vector.broadcast %cst_23 : f32 to vector<16x128xf32>
    %37 = arith.addf %36, %35 : vector<16x128xf32>
    %38 = tpu.reciprocal %37 {approx = true} : vector<16x128xf32> -> vector<16x128xf32>
    %c0_24 = arith.constant 0 : index
    %c0_25 = arith.constant 0 : index
    %39 = vector.load %arg6[%c0_24, %c0_25] : memref<32x128xf32, #tpu.memory_space<vmem>>, vector<16x128xf32>
    tpu.vector_store %arg6[%c0_24, %c0_25], %38 {strides = array<i32>} : memref<32x128xf32, #tpu.memory_space<vmem>>, vector<16x128xf32>,
    %cst_26 = arith.constant dense<0.000000e+00> : vector<16x128xf32>
    %40 = tpu.matmul %30, %31, %cst_26 {dimension_numbers = #tpu.dot_dimension_numbers<[1], [0], [0], [1], [0, 0, 1, 1], [], []>} : vector<16x128xbf16>, vector<128x128xbf16>, vector<16x128xf32> -> vector<16x128xf32>
    %cst_27 = arith.constant 0.000000e+00 : f32
    %41 = vector.broadcast %cst_27 : f32 to vector<16x128xf32>
    %42 = arith.subf %41, %40 : vector<16x128xf32>
    %43 = math.exp %42 : vector<16x128xf32>
    %cst_28 = arith.constant 1.000000e+00 : f32
    %44 = vector.broadcast %cst_28 : f32 to vector<16x128xf32>
    %45 = arith.addf %44, %43 : vector<16x128xf32>
    %46 = tpu.reciprocal %45 {approx = true} : vector<16x128xf32> -> vector<16x128xf32>
    %c16_29 = arith.constant 16 : index
    %c0_30 = arith.constant 0 : index
    %47 = vector.load %arg6[%c16_29, %c0_30] : memref<32x128xf32, #tpu.memory_space<vmem>>, vector<16x128xf32>
    tpu.vector_store %arg6[%c16_29, %c0_30], %46 {strides = array<i32>} : memref<32x128xf32, #tpu.memory_space<vmem>>, vector<16x128xf32>,
    return
  }
  func.func @transform_0(%arg0: i32) -> (i32, i32) {
    %c0_i32 = arith.constant 0 : i32
    %c0_i32_0 = arith.constant 0 : i32
    return %arg0, %c0_i32 : i32, i32
  }
  func.func @transform_1(%arg0: i32) -> (i32, i32) {
    %c0_i32 = arith.constant 0 : i32
    %c0_i32_0 = arith.constant 0 : i32
    %c0_i32_1 = arith.constant 0 : i32
    return %c0_i32, %c0_i32_0 : i32, i32
  }
  func.func @transform_2(%arg0: i32) -> (i32, i32) {
    %c0_i32 = arith.constant 0 : i32
    %c0_i32_0 = arith.constant 0 : i32
    %c0_i32_1 = arith.constant 0 : i32
    return %c0_i32, %c0_i32_0 : i32, i32
  }
  func.func @transform_3(%arg0: i32) -> (i32, i32) {
    %c0_i32 = arith.constant 0 : i32
    %c0_i32_0 = arith.constant 0 : i32
    %c0_i32_1 = arith.constant 0 : i32
    return %c0_i32, %c0_i32_0 : i32, i32
  }
  func.func @transform_4(%arg0: i32) -> (i32, i32) {
    %c0_i32 = arith.constant 0 : i32
    %c0_i32_0 = arith.constant 0 : i32
    %c0_i32_1 = arith.constant 0 : i32
    return %c0_i32, %c0_i32_0 : i32, i32
  }
  func.func @transform_5(%arg0: i32) -> (i32, i32) {
    %c0_i32 = arith.constant 0 : i32
    %c0_i32_0 = arith.constant 0 : i32
    return %arg0, %c0_i32 : i32, i32
  }
}

module attributes {stable_mosaic.version = 11 : i64} {
  func.func @_enn_kernel(%arg0: i32, %arg1: memref<32x256xbf16, #tpu.memory_space<vmem>>, %arg2: memref<256x128xbf16, #tpu.memory_space<vmem>>, %arg3: memref<128x128xbf16, #tpu.memory_space<vmem>>, %arg4: memref<128x128xbf16, #tpu.memory_space<vmem>>, %arg5: memref<128x128xbf16, #tpu.memory_space<vmem>>, %arg6: memref<32x128xf32, #tpu.memory_space<vmem>>) attributes {dimension_semantics = [#tpu.dimension_semantics<parallel>], iteration_bounds = array<i64: 2>, scalar_prefetch = 0 : i64, scratch_operands = 0 : i64, tpu.core_type = #tpu.core_type<tc>, window_params = [{transform_indices = @transform_0, window_bounds = array<i64: 32, 256>}, {pipeline_mode = #tpu.pipeline_mode<synchronous>, transform_indices = @transform_1, window_bounds = array<i64: 256, 128>}, {pipeline_mode = #tpu.pipeline_mode<synchronous>, transform_indices = @transform_2, window_bounds = array<i64: 128, 128>}, {pipeline_mode = #tpu.pipeline_mode<synchronous>, transform_indices = @transform_3, window_bounds = array<i64: 128, 128>}, {pipeline_mode = #tpu.pipeline_mode<synchronous>, transform_indices = @transform_4, window_bounds = array<i64: 128, 128>}, {transform_indices = @transform_5, window_bounds = array<i64: 32, 128>}]} {
    %c0 = arith.constant 0 : index
    %c0_0 = arith.constant 0 : index
    %0 = vector.load %arg1[%c0, %c0_0] : memref<32x256xbf16, #tpu.memory_space<vmem>>, vector<16x256xbf16>
    %c16 = arith.constant 16 : index
    %c0_1 = arith.constant 0 : index
    %1 = vector.load %arg1[%c16, %c0_1] : memref<32x256xbf16, #tpu.memory_space<vmem>>, vector<16x256xbf16>
    %c0_2 = arith.constant 0 : index
    %c0_3 = arith.constant 0 : index
    %2 = vector.load %arg2[%c0_2, %c0_3] : memref<256x128xbf16, #tpu.memory_space<vmem>>, vector<256x128xbf16>
    %cst = arith.constant dense<0.000000e+00> : vector<16x128xf32>
    %3 = tpu.matmul %0, %2, %cst {dimension_numbers = #tpu.dot_dimension_numbers<[1], [0], [0], [1], [0, 0, 1, 1], [], []>} : vector<16x256xbf16>, vector<256x128xbf16>, vector<16x128xf32> -> vector<16x128xf32>
    %cst_4 = arith.constant dense<0.000000e+00> : vector<16x128xf32>
    %4 = tpu.matmul %1, %2, %cst_4 {dimension_numbers = #tpu.dot_dimension_numbers<[1], [0], [0], [1], [0, 0, 1, 1], [], []>} : vector<16x256xbf16>, vector<256x128xbf16>, vector<16x128xf32> -> vector<16x128xf32>
    %cst_5 = arith.constant 0.000000e+00 : f32
    %5 = vector.broadcast %cst_5 : f32 to vector<16x128xf32>
    %6 = arith.maximumf %3, %5 : vector<16x128xf32>
    %cst_6 = arith.constant 0.000000e+00 : f32
    %7 = vector.broadcast %cst_6 : f32 to vector<16x128xf32>
    %8 = arith.maximumf %4, %7 : vector<16x128xf32>
    %9 = arith.truncf %6 : vector<16x128xf32> to vector<16x128xbf16>
    %10 = arith.truncf %8 : vector<16x128xf32> to vector<16x128xbf16>
    %c0_7 = arith.constant 0 : index
    %c0_8 = arith.constant 0 : index
    %11 = vector.load %arg3[%c0_7, %c0_8] : memref<128x128xbf16, #tpu.memory_space<vmem>>, vector<128x128xbf16>
    %cst_9 = arith.constant dense<0.000000e+00> : vector<16x128xf32>
    %12 = tpu.matmul %9, %11, %cst_9 {dimension_numbers = #tpu.dot_dimension_numbers<[1], [0], [0], [1], [0, 0, 1, 1], [], []>} : vector<16x128xbf16>, vector<128x128xbf16>, vector<16x128xf32> -> vector<16x128xf32>
    %cst_10 = arith.constant dense<0.000000e+00> : vector<16x128xf32>
    %13 = tpu.matmul %10, %11, %cst_10 {dimension_numbers = #tpu.dot_dimension_numbers<[1], [0], [0], [1], [0, 0, 1, 1], [], []>} : vector<16x128xbf16>, vector<128x128xbf16>, vector<16x128xf32> -> vector<16x128xf32>
    %cst_11 = arith.constant 0.000000e+00 : f32
    %14 = vector.broadcast %cst_11 : f32 to vector<16x128xf32>
    %15 = arith.maximumf %12, %14 : vector<16x128xf32>
    %cst_12 = arith.constant 0.000000e+00 : f32
    %16 = vector.broadcast %cst_12 : f32 to vector<16x128xf32>
    %17 = arith.maximumf %13, %16 : vector<16x128xf32>
    %18 = arith.truncf %15 : vector<16x128xf32> to vector<16x128xbf16>
    %19 = arith.truncf %17 : vector<16x128xf32> to vector<16x128xbf16>
    %c0_13 = arith.constant 0 : index
    %c0_14 = arith.constant 0 : index
    %20 = vector.load %arg4[%c0_13, %c0_14] : memref<128x128xbf16, #tpu.memory_space<vmem>>, vector<128x128xbf16>
    %cst_15 = arith.constant dense<0.000000e+00> : vector<16x128xf32>
    %21 = tpu.matmul %18, %20, %cst_15 {dimension_numbers = #tpu.dot_dimension_numbers<[1], [0], [0], [1], [0, 0, 1, 1], [], []>} : vector<16x128xbf16>, vector<128x128xbf16>, vector<16x128xf32> -> vector<16x128xf32>
    %cst_16 = arith.constant dense<0.000000e+00> : vector<16x128xf32>
    %22 = tpu.matmul %19, %20, %cst_16 {dimension_numbers = #tpu.dot_dimension_numbers<[1], [0], [0], [1], [0, 0, 1, 1], [], []>} : vector<16x128xbf16>, vector<128x128xbf16>, vector<16x128xf32> -> vector<16x128xf32>
    %23 = arith.addf %21, %6 : vector<16x128xf32>
    %24 = arith.addf %22, %8 : vector<16x128xf32>
    %cst_17 = arith.constant 0.000000e+00 : f32
    %25 = vector.broadcast %cst_17 : f32 to vector<16x128xf32>
    %26 = arith.maximumf %23, %25 : vector<16x128xf32>
    %cst_18 = arith.constant 0.000000e+00 : f32
    %27 = vector.broadcast %cst_18 : f32 to vector<16x128xf32>
    %28 = arith.maximumf %24, %27 : vector<16x128xf32>
    %29 = arith.truncf %26 : vector<16x128xf32> to vector<16x128xbf16>
    %30 = arith.truncf %28 : vector<16x128xf32> to vector<16x128xbf16>
    %c0_19 = arith.constant 0 : index
    %c0_20 = arith.constant 0 : index
    %31 = vector.load %arg5[%c0_19, %c0_20] : memref<128x128xbf16, #tpu.memory_space<vmem>>, vector<128x128xbf16>
    %cst_21 = arith.constant dense<0.000000e+00> : vector<16x128xf32>
    %32 = tpu.matmul %29, %31, %cst_21 {dimension_numbers = #tpu.dot_dimension_numbers<[1], [0], [0], [1], [0, 0, 1, 1], [], []>} : vector<16x128xbf16>, vector<128x128xbf16>, vector<16x128xf32> -> vector<16x128xf32>
    %cst_22 = arith.constant 0.000000e+00 : f32
    %33 = vector.broadcast %cst_22 : f32 to vector<16x128xf32>
    %34 = arith.subf %33, %32 : vector<16x128xf32>
    %35 = math.exp %34 : vector<16x128xf32>
    %cst_23 = arith.constant 1.000000e+00 : f32
    %36 = vector.broadcast %cst_23 : f32 to vector<16x128xf32>
    %37 = arith.addf %36, %35 : vector<16x128xf32>
    %38 = tpu.reciprocal %37 {approx = true} : vector<16x128xf32> -> vector<16x128xf32>
    %c0_24 = arith.constant 0 : index
    %c0_25 = arith.constant 0 : index
    %39 = vector.load %arg6[%c0_24, %c0_25] : memref<32x128xf32, #tpu.memory_space<vmem>>, vector<16x128xf32>
    tpu.vector_store %arg6[%c0_24, %c0_25], %38 {strides = array<i32>} : memref<32x128xf32, #tpu.memory_space<vmem>>, vector<16x128xf32>,
    %cst_26 = arith.constant dense<0.000000e+00> : vector<16x128xf32>
    %40 = tpu.matmul %30, %31, %cst_26 {dimension_numbers = #tpu.dot_dimension_numbers<[1], [0], [0], [1], [0, 0, 1, 1], [], []>} : vector<16x128xbf16>, vector<128x128xbf16>, vector<16x128xf32> -> vector<16x128xf32>
    %cst_27 = arith.constant 0.000000e+00 : f32
    %41 = vector.broadcast %cst_27 : f32 to vector<16x128xf32>
    %42 = arith.subf %41, %40 : vector<16x128xf32>
    %43 = math.exp %42 : vector<16x128xf32>
    %cst_28 = arith.constant 1.000000e+00 : f32
    %44 = vector.broadcast %cst_28 : f32 to vector<16x128xf32>
    %45 = arith.addf %44, %43 : vector<16x128xf32>
    %46 = tpu.reciprocal %45 {approx = true} : vector<16x128xf32> -> vector<16x128xf32>
    %c16_29 = arith.constant 16 : index
    %c0_30 = arith.constant 0 : index
    %47 = vector.load %arg6[%c16_29, %c0_30] : memref<32x128xf32, #tpu.memory_space<vmem>>, vector<16x128xf32>
    tpu.vector_store %arg6[%c16_29, %c0_30], %46 {strides = array<i32>} : memref<32x128xf32, #tpu.memory_space<vmem>>, vector<16x128xf32>,
    return
  }
  func.func @transform_0(%arg0: i32) -> (i32, i32) {
    %c0_i32 = arith.constant 0 : i32
    %c0_i32_0 = arith.constant 0 : i32
    return %arg0, %c0_i32 : i32, i32
  }
  func.func @transform_1(%arg0: i32) -> (i32, i32) {
    %c0_i32 = arith.constant 0 : i32
    %c0_i32_0 = arith.constant 0 : i32
    %c0_i32_1 = arith.constant 0 : i32
    return %c0_i32, %c0_i32_0 : i32, i32
  }
  func.func @transform_2(%arg0: i32) -> (i32, i32) {
    %c0_i32 = arith.constant 0 : i32
    %c0_i32_0 = arith.constant 0 : i32
    %c0_i32_1 = arith.constant 0 : i32
    return %c0_i32, %c0_i32_0 : i32, i32
  }
  func.func @transform_3(%arg0: i32) -> (i32, i32) {
    %c0_i32 = arith.constant 0 : i32
    %c0_i32_0 = arith.constant 0 : i32
    %c0_i32_1 = arith.constant 0 : i32
    return %c0_i32, %c0_i32_0 : i32, i32
  }
  func.func @transform_4(%arg0: i32) -> (i32, i32) {
    %c0_i32 = arith.constant 0 : i32
    %c0_i32_0 = arith.constant 0 : i32
    %c0_i32_1 = arith.constant 0 : i32
    return %c0_i32, %c0_i32_0 : i32, i32
  }
  func.func @transform_5(%arg0: i32) -> (i32, i32) {
    %c0_i32 = arith.constant 0 : i32
    %c0_i32_0 = arith.constant 0 : i32
    return %arg0, %c0_i32 : i32, i32
  }
}

</mosaic_0001>

<llo_original>
// kernel: tpu_custom_call.1
$region0: #{tpu_custom_call.1}
  #allocation0 [shape = 'u32[]', space=smem, size = 0x4, offset = 0x4, fixed_abs, tag = 'smem constant byte address 0x4 - core index']
  #allocation1 [shape = 'u32[144,128]{1,0:T(1,128)}', space=vmem, size = 0x12000, scoped, tag = 'internal scratch']
  %s0 = inlined_call_operand.hbm [shape: bf16[64,256], index: 0, kind: input, shape index: {}]
  %s1 = inlined_call_operand.hbm [shape: bf16[256,128], index: 1, kind: input, shape index: {}]
  %s2 = inlined_call_operand.hbm [shape: bf16[128,128], index: 2, kind: input, shape index: {}]
  %s3 = inlined_call_operand.hbm [shape: bf16[128,128], index: 3, kind: input, shape index: {}]
  %s4 = inlined_call_operand.hbm [shape: bf16[128,128], index: 4, kind: input, shape index: {}]
  %s5 = inlined_call_operand.hbm [shape: f32[64,128], index: 5, kind: output, shape index: {}]
  %s6 = sld [smem:[#allocation0]]
  $region73: #{tpu_custom_call.1} parent=0
    _
  %s8 = ssub.s32 1, %s6
  %s9 = scalar_select 0, %s8, %s6
  $region1: #{tpu_custom_call.1} parent=0
    #allocation2 [shape = 'u8[32768]{0}', space=vmem, size = 0x8000, scoped, tag = 'input window, operand 0']
    #allocation3 [shape = 's32[2]{0}', space=sflag, size = 0x8, scoped, tag = 'scoped memory for tpu_custom_call.1']
    #allocation4 [shape = 's32[2]{0}', space=sflag, size = 0x8, scoped, tag = 'scoped memory for tpu_custom_call.1']
    #allocation5 [shape = 'u8[65536]{0}', space=vmem, size = 0x10000, scoped, tag = 'input window, operand 1, single buffered']
    #allocation6 [shape = 's32[1]{0}', space=sflag, size = 0x4, scoped, tag = 'scoped memory for tpu_custom_call.1']
    #allocation7 [shape = 'u8[32768]{0}', space=vmem, size = 0x8000, scoped, tag = 'input window, operand 2, single buffered']
    #allocation8 [shape = 'u8[32768]{0}', space=vmem, size = 0x8000, scoped, tag = 'input window, operand 3, single buffered']
    #allocation9 [shape = 's32[1]{0}', space=sflag, size = 0x4, scoped, tag = 'scoped memory for tpu_custom_call.1']
    #allocation10 [shape = 'u8[32768]{0}', space=vmem, size = 0x8000, scoped, tag = 'input window, operand 4, single buffered']
    #allocation11 [shape = 'u8[32768]{0}', space=vmem, size = 0x8000, scoped, tag = 'output window, operand 0']
    %10 = vsyncpa [#allocation3], 0
    %s11 = scalar_lea.sflag [#allocation3], 1
    %12 = vsyncpa %s11, 0
    %13 = vsyncpa [#allocation6], 0
    %14 = vsyncpa [#allocation9], 0
    %15 = vsyncpa [#allocation4], 0
    %s16 = scalar_lea.sflag [#allocation4], 1
    %17 = vsyncpa %s16, 0
    loop: start=0, step=1, limit=4
    $region2: #{tpu_custom_call.1} parent=1 // loop_pre_header
      _
    $region3: #{tpu_custom_call.1} parent=1 // loop_header
      %s19 = sphi 0, %s23
      %p20 = scmp.ge.s32.totalorder %s19, 4
      %s29 = sphi 0, %s31
      %s32 = sphi 0, %s29
      %s33 = sphi 0, %s32
      %s49 = sphi 0, %s33
      %s53 = sphi 0, %s53
      %s55 = sphi 0, %s53
      %s56 = sphi 0, %s55
      %s70 = sphi 0, %s56
      %s74 = sphi 0, %s74
      %s76 = sphi 0, %s74
      %s77 = sphi 0, %s76
      %s91 = sphi 0, %s77
      %s95 = sphi 0, %s95
      %s97 = sphi 0, %s95
      %s98 = sphi 0, %s97
      %s112 = sphi 0, %s98
      %s116 = sphi 0, %s116
      %s118 = sphi 0, %s116
      %s119 = sphi 0, %s118
      %s133 = sphi 0, %s119
      %s139 = sphi 0, %s141
      %s142 = sphi 0, %s139
      %s143 = sphi 0, %s142
      %s159 = sphi 0, %s143
    $region4: #{tpu_custom_call.1} parent=1 // loop_header_branch
      %22 = sbr.rel (%p20) target = $region8
    $region5: #{tpu_custom_call.1} parent=1 // loop_body
      %s24 = ssub.s32 %s19, 1
      %s25 = ssub.s32 %s19, 2
      %s26 = sadd.s32 %s19, 1
      %s27 = ssub.s32 %s19, %s26
      %p28 = scmp.eq.s32.totalorder %s27, 0
      %s30 = sadd.s32 %s29, 1
      %s31 = scalar_select %p28, %s29, %s30
      %p34 = pneg %p28
      %p35 = scmp.eq.s32.totalorder %s19, 1
      %p36 = por %p34, %p35
      %p37 = scmp.ne.s32.totalorder %s29, %s32
      %p38 = scmp.eq.s32.totalorder %s19, 0
      %p39 = por %p37, %p38
      %p40 = scmp.ne.s32.totalorder %s29, %s32
      %p41 = scmp.eq.s32.totalorder %s24, 1
      %p42 = por %p40, %p41
      %p43 = scmp.ne.s32.totalorder %s32, %s33
      %p44 = scmp.eq.s32.totalorder %s24, 0
      %p45 = por %p43, %p44
      %p46 = scmp.ne.s32.totalorder %s32, %s33
      %p47 = scmp.eq.s32.totalorder %s25, 1
      %p48 = por %p46, %p47
      %p50 = scmp.ne.s32.totalorder %s33, %s49
      %p51 = scmp.eq.s32.totalorder %s25, 0
      %p52 = por %p50, %p51
      %s54 = sadd.s32 %s53, 1
      %p57 = scmp.eq.s32.totalorder %s19, 1
      %p58 = scmp.ne.s32.totalorder %s53, %s55
      %p59 = scmp.eq.s32.totalorder %s19, 0
      %p60 = por %p58, %p59
      %p61 = scmp.ne.s32.totalorder %s53, %s55
      %p62 = scmp.eq.s32.totalorder %s24, 1
      %p63 = por %p61, %p62
      %p64 = scmp.ne.s32.totalorder %s55, %s56
      %p65 = scmp.eq.s32.totalorder %s24, 0
      %p66 = por %p64, %p65
      %p67 = scmp.ne.s32.totalorder %s55, %s56
      %p68 = scmp.eq.s32.totalorder %s25, 1
      %p69 = por %p67, %p68
      %p71 = scmp.ne.s32.totalorder %s56, %s70
      %p72 = scmp.eq.s32.totalorder %s25, 0
      %p73 = por %p71, %p72
      %s75 = sadd.s32 %s74, 1
      %p78 = scmp.eq.s32.totalorder %s19, 1
      %p79 = scmp.ne.s32.totalorder %s74, %s76
      %p80 = scmp.eq.s32.totalorder %s19, 0
      %p81 = por %p79, %p80
      %p82 = scmp.ne.s32.totalorder %s74, %s76
      %p83 = scmp.eq.s32.totalorder %s24, 1
      %p84 = por %p82, %p83
      %p85 = scmp.ne.s32.totalorder %s76, %s77
      %p86 = scmp.eq.s32.totalorder %s24, 0
      %p87 = por %p85, %p86
      %p88 = scmp.ne.s32.totalorder %s76, %s77
      %p89 = scmp.eq.s32.totalorder %s25, 1
      %p90 = por %p88, %p89
      %p92 = scmp.ne.s32.totalorder %s77, %s91
      %p93 = scmp.eq.s32.totalorder %s25, 0
      %p94 = por %p92, %p93
      %s96 = sadd.s32 %s95, 1
      %p99 = scmp.eq.s32.totalorder %s19, 1
      %p100 = scmp.ne.s32.totalorder %s95, %s97
      %p101 = scmp.eq.s32.totalorder %s19, 0
      %p102 = por %p100, %p101
      %p103 = scmp.ne.s32.totalorder %s95, %s97
      %p104 = scmp.eq.s32.totalorder %s24, 1
      %p105 = por %p103, %p104
      %p106 = scmp.ne.s32.totalorder %s97, %s98
      %p107 = scmp.eq.s32.totalorder %s24, 0
      %p108 = por %p106, %p107
      %p109 = scmp.ne.s32.totalorder %s97, %s98
      %p110 = scmp.eq.s32.totalorder %s25, 1
      %p111 = por %p109, %p110
      %p113 = scmp.ne.s32.totalorder %s98, %s112
      %p114 = scmp.eq.s32.totalorder %s25, 0
      %p115 = por %p113, %p114
      %s117 = sadd.s32 %s116, 1
      %p120 = scmp.eq.s32.totalorder %s19, 1
      %p121 = scmp.ne.s32.totalorder %s116, %s118
      %p122 = scmp.eq.s32.totalorder %s19, 0
      %p123 = por %p121, %p122
      %p124 = scmp.ne.s32.totalorder %s116, %s118
      %p125 = scmp.eq.s32.totalorder %s24, 1
      %p126 = por %p124, %p125
      %p127 = scmp.ne.s32.totalorder %s118, %s119
      %p128 = scmp.eq.s32.totalorder %s24, 0
      %p129 = por %p127, %p128
      %p130 = scmp.ne.s32.totalorder %s118, %s119
      %p131 = scmp.eq.s32.totalorder %s25, 1
      %p132 = por %p130, %p131
      %p134 = scmp.ne.s32.totalorder %s119, %s133
      %p135 = scmp.eq.s32.totalorder %s25, 0
      %p136 = por %p134, %p135
      %s137 = ssub.s32 %s19, %s26
      %p138 = scmp.eq.s32.totalorder %s137, 0
      %s140 = sadd.s32 %s139, 1
      %s141 = scalar_select %p138, %s139, %s140
      %p144 = pneg %p138
      %p145 = scmp.eq.s32.totalorder %s19, 1
      %p146 = por %p144, %p145
      %p147 = scmp.ne.s32.totalorder %s139, %s142
      %p148 = scmp.eq.s32.totalorder %s19, 0
      %p149 = por %p147, %p148
      %p150 = scmp.ne.s32.totalorder %s139, %s142
      %p151 = scmp.eq.s32.totalorder %s24, 1
      %p152 = por %p150, %p151
      %p153 = scmp.ne.s32.totalorder %s142, %s143
      %p154 = scmp.eq.s32.totalorder %s24, 0
      %p155 = por %p153, %p154
      %p156 = scmp.ne.s32.totalorder %s142, %s143
      %p157 = scmp.eq.s32.totalorder %s25, 1
      %p158 = por %p156, %p157
      %p160 = scmp.ne.s32.totalorder %s143, %s159
      %p161 = scmp.eq.s32.totalorder %s25, 0
      %p162 = por %p160, %p161
      %p163 = scmp.le.s32.totalorder 1, %s19
      %p164 = scmp.lt.s32.totalorder %s19, 3
      %p165 = pnand %p163, %p164
      %p166 = pneg %p165
      // Predicated region
      $region9: #{tpu_custom_call.1} parent=5 // pred_check
        _
      $region10: #{tpu_custom_call.1} parent=5 // pred_check_branch
        %168 = sbr.rel (%p165) target = $region12
      $region11: #{tpu_custom_call.1} parent=5 // pred_region
        %s169 = ssub.s32 %s19, 1
        // Predicated region
        $region13: #{tpu_custom_call.1} parent=11 // pred_check
          %p170 = pneg %p66
        $region14: #{tpu_custom_call.1} parent=11 // pred_check_branch
          %172 = sbr.rel (%p170) target = $region16
        $region15: #{tpu_custom_call.1} parent=11 // pred_region
          %s174 = ssub.s32 2048, 2048
          %175 = vsyncadd [#allocation6], %s174
          %s176 = sshll.u32 [#allocation5], 4
          %s177 = int_to_ptr.vmem [resolvable:$true] %s176
          %182 = dma.hbm_to_vmem [thread:$0]  %s1, 2048, %s177, [#allocation6], 64, 64, 4
        $region16: #{tpu_custom_call.1} parent=11 // pred_fallthru
          _
        // Predicated region
        $region17: #{tpu_custom_call.1} parent=11 // pred_check
          %p183 = pneg %p87
        $region18: #{tpu_custom_call.1} parent=11 // pred_check_branch
          %185 = sbr.rel (%p183) target = $region20
        $region19: #{tpu_custom_call.1} parent=11 // pred_region
          %s187 = ssub.s32 1024, 1024
          %188 = vsyncadd [#allocation6], %s187
          %s189 = sshll.u32 [#allocation7], 4
          %s190 = int_to_ptr.vmem [resolvable:$true] %s189
          %195 = dma.hbm_to_vmem [thread:$0]  %s2, 1024, %s190, [#allocation6], 64, 64, 4
        $region20: #{tpu_custom_call.1} parent=11 // pred_fallthru
          _
        // Predicated region
        $region21: #{tpu_custom_call.1} parent=11 // pred_check
          %p196 = pneg %p108
        $region22: #{tpu_custom_call.1} parent=11 // pred_check_branch
          %198 = sbr.rel (%p196) target = $region24
        $region23: #{tpu_custom_call.1} parent=11 // pred_region
          %s200 = ssub.s32 1024, 1024
          %201 = vsyncadd [#allocation9], %s200
          %s202 = sshll.u32 [#allocation8], 4
          %s203 = int_to_ptr.vmem [resolvable:$true] %s202
          %208 = dma.hbm_to_vmem [thread:$0]  %s3, 1024, %s203, [#allocation9], 64, 64, 4
        $region24: #{tpu_custom_call.1} parent=11 // pred_fallthru
          _
        // Predicated region
        $region25: #{tpu_custom_call.1} parent=11 // pred_check
          %p209 = pneg %p129
        $region26: #{tpu_custom_call.1} parent=11 // pred_check_branch
          %211 = sbr.rel (%p209) target = $region28
        $region27: #{tpu_custom_call.1} parent=11 // pred_region
          %s213 = ssub.s32 1024, 1024
          %214 = vsyncadd [#allocation9], %s213
          %s215 = sshll.u32 [#allocation10], 4
          %s216 = int_to_ptr.vmem [resolvable:$true] %s215
          %221 = dma.hbm_to_vmem [thread:$0]  %s4, 1024, %s216, [#allocation9], 64, 64, 4
        $region28: #{tpu_custom_call.1} parent=11 // pred_fallthru
          _
      $region12: #{tpu_custom_call.1} parent=5 // pred_fallthru
        _
      %p222 = scmp.lt.s32.totalorder %s19, 2
      // Predicated region
      $region29: #{tpu_custom_call.1} parent=5 // pred_check
        %p223 = pneg %p222
      $region30: #{tpu_custom_call.1} parent=5 // pred_check_branch
        %225 = sbr.rel (%p223) target = $region32
      $region31: #{tpu_custom_call.1} parent=5 // pred_region
        // Predicated region
        $region33: #{tpu_custom_call.1} parent=31 // pred_check
          %p226 = pneg %p39
        $region34: #{tpu_custom_call.1} parent=31 // pred_check_branch
          %228 = sbr.rel (%p226) target = $region36
        $region35: #{tpu_custom_call.1} parent=31 // pred_region
          %s229 = sand.u32 %s29, 1
          %s230 = scalar_lea.sflag [#allocation3], %s229
          %s231 = sand.u32 %s29, 1
          %s232 = smul.addr %s231, 32
          %s233 = scalar_lea.vmem [#allocation2], %s232
          %s234 = smul.u32 4, %s19
          %s236 = ssub.s32 512, 512
          %237 = vsyncadd %s230, %s236
          %s238 = smul.addr %s234, 2
          %s239 = smul.addr %s238, 64
          %s240 = scalar_lea.hbm %s0, %s239
          %s241 = sshll.u32 %s233, 4
          %s242 = int_to_ptr.vmem [resolvable:$true] %s241
          %247 = dma.hbm_to_vmem [thread:$0]  %s240, 512, %s242, %s230, 128, 128, 8
        $region36: #{tpu_custom_call.1} parent=31 // pred_fallthru
          _
      $region32: #{tpu_custom_call.1} parent=5 // pred_fallthru
        _
      %p248 = scmp.le.s32.totalorder 1, %s19
      %p249 = scmp.lt.s32.totalorder %s19, 3
      %p250 = pnand %p248, %p249
      %p251 = pneg %p250
      // Predicated region
      $region37: #{tpu_custom_call.1} parent=5 // pred_check
        _
      $region38: #{tpu_custom_call.1} parent=5 // pred_check_branch
        %253 = sbr.rel (%p250) target = $region40
      $region39: #{tpu_custom_call.1} parent=5 // pred_region
        %s254 = ssub.s32 %s19, 1
        %s255 = sand.u32 %s32, 1
        %s256 = scalar_lea.sflag [#allocation3], %s255
        %s257 = sand.u32 %s32, 1
        %s258 = smul.addr %s257, 32
        %s259 = scalar_lea.vmem [#allocation2], %s258
        // Predicated region
        $region41: #{tpu_custom_call.1} parent=39 // pred_check
          %p260 = pneg %p45
        $region42: #{tpu_custom_call.1} parent=39 // pred_check_branch
          %262 = sbr.rel (%p260) target = $region44
        $region43: #{tpu_custom_call.1} parent=39 // pred_region
          %263 = dma.done %s256, 512
        $region44: #{tpu_custom_call.1} parent=39 // pred_fallthru
          _
        // Predicated region
        $region45: #{tpu_custom_call.1} parent=39 // pred_check
          %p264 = pneg %p66
        $region46: #{tpu_custom_call.1} parent=39 // pred_check_branch
          %266 = sbr.rel (%p264) target = $region48
        $region47: #{tpu_custom_call.1} parent=39 // pred_region
          %267 = dma.done [#allocation6], 2048
        $region48: #{tpu_custom_call.1} parent=39 // pred_fallthru
          _
        // Predicated region
        $region49: #{tpu_custom_call.1} parent=39 // pred_check
          %p268 = pneg %p87
        $region50: #{tpu_custom_call.1} parent=39 // pred_check_branch
          %270 = sbr.rel (%p268) target = $region52
        $region51: #{tpu_custom_call.1} parent=39 // pred_region
          %271 = dma.done [#allocation6], 1024
        $region52: #{tpu_custom_call.1} parent=39 // pred_fallthru
          _
        // Predicated region
        $region53: #{tpu_custom_call.1} parent=39 // pred_check
          %p272 = pneg %p108
        $region54: #{tpu_custom_call.1} parent=39 // pred_check_branch
          %274 = sbr.rel (%p272) target = $region56
        $region55: #{tpu_custom_call.1} parent=39 // pred_region
          %275 = dma.done [#allocation9], 1024
        $region56: #{tpu_custom_call.1} parent=39 // pred_fallthru
          _
        // Predicated region
        $region57: #{tpu_custom_call.1} parent=39 // pred_check
          %p276 = pneg %p129
        $region58: #{tpu_custom_call.1} parent=39 // pred_check_branch
          %278 = sbr.rel (%p276) target = $region60
        $region59: #{tpu_custom_call.1} parent=39 // pred_region
          %279 = dma.done [#allocation9], 1024
        $region60: #{tpu_custom_call.1} parent=39 // pred_fallthru
          _
        %s280 = sand.u32 %s32, 1
        %s281 = scalar_lea.sflag [#allocation3], %s280
        %s282 = sand.u32 %s32, 1
        %s283 = smul.addr %s282, 32
        %s284 = scalar_lea.vmem [#allocation2], %s283
        %p285 = pneg %p45
        %p286 = pneg %p42
        %p287 = pneg %p66
        %p288 = pneg %p63
        %p289 = pneg %p87
        %p290 = pneg %p84
        %p291 = pneg %p108
        %p292 = pneg %p105
        %p293 = pneg %p129
        %p294 = pneg %p126
        %p295 = pneg %p155
        %p296 = pneg %p152
        %s297 = sand.u32 %s142, 1
        %s298 = scalar_lea.sflag [#allocation4], %s297
        %s299 = sand.u32 %s142, 1
        %s300 = smul.addr %s299, 32
        %s301 = scalar_lea.vmem [#allocation11], %s300
        %s302 = smul.u32 4, %s24
        %s303 = smul.u32 4, %s24
        %v305 = vld [vmem:[%s259] sm:$0xff]
        %v306 = vld [vmem:[%s259 + $0x8] sm:$0xff]
        %v307 = vld [vmem:[%s259 + $0x10] sm:$0xff]
        %v308 = vld [vmem:[%s259 + $0x18] sm:$0xff]
        %v309 = vld [vmem:[#allocation5] sm:$0xf]
        %v310 = vld [vmem:[#allocation5 + $0x4] sm:$0xf]
        %v311 = vld [vmem:[#allocation5 + $0x8] sm:$0xf]
        %v312 = vld [vmem:[#allocation5 + $0xc] sm:$0xf]
        %v313 = vld [vmem:[#allocation5 + $0x10] sm:$0xf]
        %v314 = vld [vmem:[#allocation5 + $0x14] sm:$0xf]
        %v315 = vld [vmem:[#allocation5 + $0x18] sm:$0xf]
        %v316 = vld [vmem:[#allocation5 + $0x1c] sm:$0xf]
        %v317 = vld [vmem:[#allocation5 + $0x20] sm:$0xf]
        %v318 = vld [vmem:[#allocation5 + $0x24] sm:$0xf]
        %v319 = vld [vmem:[#allocation5 + $0x28] sm:$0xf]
        %v320 = vld [vmem:[#allocation5 + $0x2c] sm:$0xf]
        %v321 = vld [vmem:[#allocation5 + $0x30] sm:$0xf]
        %v322 = vld [vmem:[#allocation5 + $0x34] sm:$0xf]
        %v323 = vld [vmem:[#allocation5 + $0x38] sm:$0xf]
        %v324 = vld [vmem:[#allocation5 + $0x3c] sm:$0xf]
        %v325 = vld [vmem:[#allocation5 + $0x40] sm:$0xf]
        %v326 = vld [vmem:[#allocation5 + $0x44] sm:$0xf]
        %v327 = vld [vmem:[#allocation5 + $0x48] sm:$0xf]
        %v328 = vld [vmem:[#allocation5 + $0x4c] sm:$0xf]
        %v329 = vld [vmem:[#allocation5 + $0x50] sm:$0xf]
        %v330 = vld [vmem:[#allocation5 + $0x54] sm:$0xf]
        %v331 = vld [vmem:[#allocation5 + $0x58] sm:$0xf]
        %v332 = vld [vmem:[#allocation5 + $0x5c] sm:$0xf]
        %v333 = vld [vmem:[#allocation5 + $0x60] sm:$0xf]
        %v334 = vld [vmem:[#allocation5 + $0x64] sm:$0xf]
        %v335 = vld [vmem:[#allocation5 + $0x68] sm:$0xf]
        %v336 = vld [vmem:[#allocation5 + $0x6c] sm:$0xf]
        %v337 = vld [vmem:[#allocation5 + $0x70] sm:$0xf]
        %v338 = vld [vmem:[#allocation5 + $0x74] sm:$0xf]
        %v339 = vld [vmem:[#allocation5 + $0x78] sm:$0xf]
        %v340 = vld [vmem:[#allocation5 + $0x7c] sm:$0xf]
        %v343 = vunpack.c.l.b16 %v305
        %v344 = vunpack.c.h.b16 %v305
        %v345 = vunpack.c.l.b16 %v306
        %v346 = vunpack.c.h.b16 %v306
        %v347 = vpack.c.b16 %v345, %v343
        %v348 = vpack.c.b16 %v346, %v344
        %v383 = vunpack.c.l.b16 %v309
        %v384 = vunpack.c.l.b16 %v310
        %v385 = vunpack.c.l.b16 %v311
        %v386 = vunpack.c.l.b16 %v312
        %v387 = vunpack.c.l.b16 %v313
        %v388 = vunpack.c.l.b16 %v314
        %v389 = vunpack.c.l.b16 %v315
        %v390 = vunpack.c.l.b16 %v316
        %v391 = vunpack.c.l.b16 %v317
        %v392 = vunpack.c.l.b16 %v318
        %v393 = vunpack.c.l.b16 %v319
        %v394 = vunpack.c.l.b16 %v320
        %v395 = vunpack.c.l.b16 %v321
        %v396 = vunpack.c.l.b16 %v322
        %v397 = vunpack.c.l.b16 %v323
        %v398 = vunpack.c.l.b16 %v324
        %v399 = vunpack.c.l.b16 %v325
        %v400 = vunpack.c.l.b16 %v326
        %v401 = vunpack.c.l.b16 %v327
        %v402 = vunpack.c.l.b16 %v328
        %v403 = vunpack.c.l.b16 %v329
        %v404 = vunpack.c.l.b16 %v330
        %v405 = vunpack.c.l.b16 %v331
        %v406 = vunpack.c.l.b16 %v332
        %v407 = vunpack.c.l.b16 %v333
        %v408 = vunpack.c.l.b16 %v334
        %v409 = vunpack.c.l.b16 %v335
        %v410 = vunpack.c.l.b16 %v336
        %v411 = vunpack.c.l.b16 %v337
        %v412 = vunpack.c.l.b16 %v338
        %v413 = vunpack.c.l.b16 %v339
        %v414 = vunpack.c.l.b16 %v340
        %v415 = vpack.c.b16 %v384, %v383
        %v416 = vpack.c.b16 %v386, %v385
        %v417 = vpack.c.b16 %v388, %v387
        %v418 = vpack.c.b16 %v390, %v389
        %v419 = vpack.c.b16 %v392, %v391
        %v420 = vpack.c.b16 %v394, %v393
        %v421 = vpack.c.b16 %v396, %v395
        %v422 = vpack.c.b16 %v398, %v397
        %v423 = vpack.c.b16 %v400, %v399
        %v424 = vpack.c.b16 %v402, %v401
        %v425 = vpack.c.b16 %v404, %v403
        %v426 = vpack.c.b16 %v406, %v405
        %v427 = vpack.c.b16 %v408, %v407
        %v428 = vpack.c.b16 %v410, %v409
        %v429 = vpack.c.b16 %v412, %v411
        %v430 = vpack.c.b16 %v414, %v413
        %447 = vmatprep.subr.bf16.mxu0 0
        %448 = vmatpush1.bf16.msra.mxu0 %v422
        %449 = vmatprep.subr.bf16.mxu0 0
        %450 = vmatpush1.bf16.msra.mxu0 %v421
        %451 = vmatprep.subr.bf16.mxu0 0
        %452 = vmatpush1.bf16.msra.mxu0 %v420
        %453 = vmatprep.subr.bf16.mxu0 0
        %454 = vmatpush1.bf16.msra.mxu0 %v419
        %455 = vmatprep.subr.bf16.mxu0 0
        %456 = vmatpush1.bf16.msra.mxu0 %v418
        %457 = vmatprep.subr.bf16.mxu0 0
        %458 = vmatpush1.bf16.msra.mxu0 %v417
        %459 = vmatprep.subr.bf16.mxu0 0
        %460 = vmatpush1.bf16.msra.mxu0 %v416
        %461 = vmatprep.subr.bf16.mxu0 0
        %462 = vmatpush1.bf16.msra.mxu0 %v415
        %463 = vmatprep.subr.bf16.mxu0 0
        %464 = vmatpush2.bf16.msra.mxu0 %v430
        %465 = vmatprep.subr.bf16.mxu0 0
        %466 = vmatpush2.bf16.msra.mxu0 %v429
        %467 = vmatprep.subr.bf16.mxu0 0
        %468 = vmatpush2.bf16.msra.mxu0 %v428
        %469 = vmatprep.subr.bf16.mxu0 0
        %470 = vmatpush2.bf16.msra.mxu0 %v427
        %471 = vmatprep.subr.bf16.mxu0 0
        %472 = vmatpush2.bf16.msra.mxu0 %v426
        %473 = vmatprep.subr.bf16.mxu0 0
        %474 = vmatpush2.bf16.msra.mxu0 %v425
        %475 = vmatprep.subr.bf16.mxu0 0
        %476 = vmatpush2.bf16.msra.mxu0 %v424
        %477 = vmatprep.subr.bf16.mxu0 0
        %478 = vmatpush2.bf16.msra.mxu0 %v423
        %479 = vmatprep.mubr.bf16.mxu0 %v348
        %480 = vmatmul.mubr.bf16.gmra.mxu0 %v347
        %v481 = vpop.f32.mrf.mxu0
        %v482 = vadd.f32 0.0, %v481
        %v483 = vpop.f32.mrf.mxu0
        %v484 = vpop.f32.mrf.mxu0
        %v485 = vadd.f32 0.0, %v484
        %v486 = vpop.f32.mrf.mxu0
        %487 = vdwg.mxu0
        %v490 = vunpack.c.l.b16 %v307
        %v491 = vunpack.c.h.b16 %v307
        %v492 = vunpack.c.l.b16 %v308
        %v493 = vunpack.c.h.b16 %v308
        %v494 = vpack.c.b16 %v492, %v490
        %v495 = vpack.c.b16 %v493, %v491
        %498 = vmatprep.subr.bf16.mxu0 0
        %499 = vmatpush1.bf16.msra.mxu0 %v422
        %500 = vmatprep.subr.bf16.mxu0 0
        %501 = vmatpush1.bf16.msra.mxu0 %v421
        %502 = vmatprep.subr.bf16.mxu0 0
        %503 = vmatpush1.bf16.msra.mxu0 %v420
        %504 = vmatprep.subr.bf16.mxu0 0
        %505 = vmatpush1.bf16.msra.mxu0 %v419
        %506 = vmatprep.subr.bf16.mxu0 0
        %507 = vmatpush1.bf16.msra.mxu0 %v418
        %508 = vmatprep.subr.bf16.mxu0 0
        %509 = vmatpush1.bf16.msra.mxu0 %v417
        %510 = vmatprep.subr.bf16.mxu0 0
        %511 = vmatpush1.bf16.msra.mxu0 %v416
        %512 = vmatprep.subr.bf16.mxu0 0
        %513 = vmatpush1.bf16.msra.mxu0 %v415
        %514 = vmatprep.subr.bf16.mxu0 0
        %515 = vmatpush2.bf16.msra.mxu0 %v430
        %516 = vmatprep.subr.bf16.mxu0 0
        %517 = vmatpush2.bf16.msra.mxu0 %v429
        %518 = vmatprep.subr.bf16.mxu0 0
        %519 = vmatpush2.bf16.msra.mxu0 %v428
        %520 = vmatprep.subr.bf16.mxu0 0
        %521 = vmatpush2.bf16.msra.mxu0 %v427
        %522 = vmatprep.subr.bf16.mxu0 0
        %523 = vmatpush2.bf16.msra.mxu0 %v426
        %524 = vmatprep.subr.bf16.mxu0 0
        %525 = vmatpush2.bf16.msra.mxu0 %v425
        %526 = vmatprep.subr.bf16.mxu0 0
        %527 = vmatpush2.bf16.msra.mxu0 %v424
        %528 = vmatprep.subr.bf16.mxu0 0
        %529 = vmatpush2.bf16.msra.mxu0 %v423
        %530 = vmatprep.mubr.bf16.mxu0 %v495
        %531 = vmatmul.mubr.bf16.gmra.mxu0 %v494
        %v532 = vpop.f32.mrf.mxu0
        %v533 = vadd.f32 0.0, %v532
        %v534 = vpop.f32.mrf.mxu0
        %v535 = vpop.f32.mrf.mxu0
        %v536 = vadd.f32 0.0, %v535
        %v537 = vpop.f32.mrf.mxu0
        %538 = vdwg.mxu0
        %v539 = vmax.f32 %v482, 0.0
        %v540 = vmax.f32 %v485, 0.0
        %v541 = vmax.f32 %v533, 0.0
        %v542 = vmax.f32 %v536, 0.0
        %v543 = vpack.c.bf16 %v540, %v539
        %v544 = vpack.c.bf16 %v542, %v541
        %v545 = vld [vmem:[#allocation7] sm:$0xf]
        %v546 = vld [vmem:[#allocation7 + $0x4] sm:$0xf]
        %v547 = vld [vmem:[#allocation7 + $0x8] sm:$0xf]
        %v548 = vld [vmem:[#allocation7 + $0xc] sm:$0xf]
        %v549 = vld [vmem:[#allocation7 + $0x10] sm:$0xf]
        %v550 = vld [vmem:[#allocation7 + $0x14] sm:$0xf]
        %v551 = vld [vmem:[#allocation7 + $0x18] sm:$0xf]
        %v552 = vld [vmem:[#allocation7 + $0x1c] sm:$0xf]
        %v553 = vld [vmem:[#allocation7 + $0x20] sm:$0xf]
        %v554 = vld [vmem:[#allocation7 + $0x24] sm:$0xf]
        %v555 = vld [vmem:[#allocation7 + $0x28] sm:$0xf]
        %v556 = vld [vmem:[#allocation7 + $0x2c] sm:$0xf]
        %v557 = vld [vmem:[#allocation7 + $0x30] sm:$0xf]
        %v558 = vld [vmem:[#allocation7 + $0x34] sm:$0xf]
        %v559 = vld [vmem:[#allocation7 + $0x38] sm:$0xf]
        %v560 = vld [vmem:[#allocation7 + $0x3c] sm:$0xf]
        %v577 = vunpack.c.l.b16 %v545
        %v578 = vunpack.c.l.b16 %v546
        %v579 = vunpack.c.l.b16 %v547
        %v580 = vunpack.c.l.b16 %v548
        %v581 = vunpack.c.l.b16 %v549
        %v582 = vunpack.c.l.b16 %v550
        %v583 = vunpack.c.l.b16 %v551
        %v584 = vunpack.c.l.b16 %v552
        %v585 = vunpack.c.l.b16 %v553
        %v586 = vunpack.c.l.b16 %v554
        %v587 = vunpack.c.l.b16 %v555
        %v588 = vunpack.c.l.b16 %v556
        %v589 = vunpack.c.l.b16 %v557
        %v590 = vunpack.c.l.b16 %v558
        %v591 = vunpack.c.l.b16 %v559
        %v592 = vunpack.c.l.b16 %v560
        %v593 = vpack.c.b16 %v578, %v577
        %v594 = vpack.c.b16 %v580, %v579
        %v595 = vpack.c.b16 %v582, %v581
        %v596 = vpack.c.b16 %v584, %v583
        %v597 = vpack.c.b16 %v586, %v585
        %v598 = vpack.c.b16 %v588, %v587
        %v599 = vpack.c.b16 %v590, %v589
        %v600 = vpack.c.b16 %v592, %v591
        %609 = vmatprep.subr.bf16.mxu0 0
        %610 = vmatpush1.bf16.msra.mxu0 %v600
        %611 = vmatprep.subr.bf16.mxu0 0
        %612 = vmatpush1.bf16.msra.mxu0 %v599
        %613 = vmatprep.subr.bf16.mxu0 0
        %614 = vmatpush1.bf16.msra.mxu0 %v598
        %615 = vmatprep.subr.bf16.mxu0 0
        %616 = vmatpush1.bf16.msra.mxu0 %v597
        %617 = vmatprep.subr.bf16.mxu0 0
        %618 = vmatpush1.bf16.msra.mxu0 %v596
        %619 = vmatprep.subr.bf16.mxu0 0
        %620 = vmatpush1.bf16.msra.mxu0 %v595
        %621 = vmatprep.subr.bf16.mxu0 0
        %622 = vmatpush1.bf16.msra.mxu0 %v594
        %623 = vmatprep.subr.bf16.mxu0 0
        %624 = vmatpush1.bf16.msra.mxu0 %v593
        %625 = vmatprep.subr.bf16.mxu0 0
        %626 = vmatpush2.bf16.msra.mxu0 0
        %627 = vmatprep.subr.bf16.mxu0 0
        %628 = vmatpush2.bf16.msra.mxu0 0
        %629 = vmatprep.subr.bf16.mxu0 0
        %630 = vmatpush2.bf16.msra.mxu0 0
        %631 = vmatprep.subr.bf16.mxu0 0
        %632 = vmatpush2.bf16.msra.mxu0 0
        %633 = vmatprep.subr.bf16.mxu0 0
        %634 = vmatpush2.bf16.msra.mxu0 0
        %635 = vmatprep.subr.bf16.mxu0 0
        %636 = vmatpush2.bf16.msra.mxu0 0
        %637 = vmatprep.subr.bf16.mxu0 0
        %638 = vmatpush2.bf16.msra.mxu0 0
        %639 = vmatprep.subr.bf16.mxu0 0
        %640 = vmatpush2.bf16.msra.mxu0 0
        %641 = vmatprep.mubr.bf16.mxu0 0
        %642 = vmatmul.mubr.bf16.gmra.mxu0 %v543
        %v643 = vpop.f32.mrf.mxu0
        %v644 = vadd.f32 0.0, %v643
        %v645 = vpop.f32.mrf.mxu0
        %v646 = vpop.f32.mrf.mxu0
        %v647 = vadd.f32 0.0, %v646
        %v648 = vpop.f32.mrf.mxu0
        %649 = vdwg.mxu0
        %650 = vmatprep.subr.bf16.mxu0 0
        %651 = vmatpush1.bf16.msra.mxu0 %v600
        %652 = vmatprep.subr.bf16.mxu0 0
        %653 = vmatpush1.bf16.msra.mxu0 %v599
        %654 = vmatprep.subr.bf16.mxu0 0
        %655 = vmatpush1.bf16.msra.mxu0 %v598
        %656 = vmatprep.subr.bf16.mxu0 0
        %657 = vmatpush1.bf16.msra.mxu0 %v597
        %658 = vmatprep.subr.bf16.mxu0 0
        %659 = vmatpush1.bf16.msra.mxu0 %v596
        %660 = vmatprep.subr.bf16.mxu0 0
        %661 = vmatpush1.bf16.msra.mxu0 %v595
        %662 = vmatprep.subr.bf16.mxu0 0
        %663 = vmatpush1.bf16.msra.mxu0 %v594
        %664 = vmatprep.subr.bf16.mxu0 0
        %665 = vmatpush1.bf16.msra.mxu0 %v593
        %666 = vmatprep.subr.bf16.mxu0 0
        %667 = vmatpush2.bf16.msra.mxu0 0
        %668 = vmatprep.subr.bf16.mxu0 0
        %669 = vmatpush2.bf16.msra.mxu0 0
        %670 = vmatprep.subr.bf16.mxu0 0
        %671 = vmatpush2.bf16.msra.mxu0 0
        %672 = vmatprep.subr.bf16.mxu0 0
        %673 = vmatpush2.bf16.msra.mxu0 0
        %674 = vmatprep.subr.bf16.mxu0 0
        %675 = vmatpush2.bf16.msra.mxu0 0
        %676 = vmatprep.subr.bf16.mxu0 0
        %677 = vmatpush2.bf16.msra.mxu0 0
        %678 = vmatprep.subr.bf16.mxu0 0
        %679 = vmatpush2.bf16.msra.mxu0 0
        %680 = vmatprep.subr.bf16.mxu0 0
        %681 = vmatpush2.bf16.msra.mxu0 0
        %682 = vmatprep.mubr.bf16.mxu0 0
        %683 = vmatmul.mubr.bf16.gmra.mxu0 %v544
        %v684 = vpop.f32.mrf.mxu0
        %v685 = vadd.f32 0.0, %v684
        %v686 = vpop.f32.mrf.mxu0
        %v687 = vpop.f32.mrf.mxu0
        %v688 = vadd.f32 0.0, %v687
        %v689 = vpop.f32.mrf.mxu0
        %690 = vdwg.mxu0
        %v691 = vmax.f32 %v644, 0.0
        %v692 = vmax.f32 %v647, 0.0
        %v693 = vmax.f32 %v685, 0.0
        %v694 = vmax.f32 %v688, 0.0
        %v695 = vpack.c.bf16 %v692, %v691
        %v696 = vpack.c.bf16 %v694, %v693
        %v697 = vld [vmem:[#allocation8] sm:$0xf]
        %v698 = vld [vmem:[#allocation8 + $0x4] sm:$0xf]
        %v699 = vld [vmem:[#allocation8 + $0x8] sm:$0xf]
        %v700 = vld [vmem:[#allocation8 + $0xc] sm:$0xf]
        %v701 = vld [vmem:[#allocation8 + $0x10] sm:$0xf]
        %v702 = vld [vmem:[#allocation8 + $0x14] sm:$0xf]
        %v703 = vld [vmem:[#allocation8 + $0x18] sm:$0xf]
        %v704 = vld [vmem:[#allocation8 + $0x1c] sm:$0xf]
        %v705 = vld [vmem:[#allocation8 + $0x20] sm:$0xf]
        %v706 = vld [vmem:[#allocation8 + $0x24] sm:$0xf]
        %v707 = vld [vmem:[#allocation8 + $0x28] sm:$0xf]
        %v708 = vld [vmem:[#allocation8 + $0x2c] sm:$0xf]
        %v709 = vld [vmem:[#allocation8 + $0x30] sm:$0xf]
        %v710 = vld [vmem:[#allocation8 + $0x34] sm:$0xf]
        %v711 = vld [vmem:[#allocation8 + $0x38] sm:$0xf]
        %v712 = vld [vmem:[#allocation8 + $0x3c] sm:$0xf]
        %v729 = vunpack.c.l.b16 %v697
        %v730 = vunpack.c.l.b16 %v698
        %v731 = vunpack.c.l.b16 %v699
        %v732 = vunpack.c.l.b16 %v700
        %v733 = vunpack.c.l.b16 %v701
        %v734 = vunpack.c.l.b16 %v702
        %v735 = vunpack.c.l.b16 %v703
        %v736 = vunpack.c.l.b16 %v704
        %v737 = vunpack.c.l.b16 %v705
        %v738 = vunpack.c.l.b16 %v706
        %v739 = vunpack.c.l.b16 %v707
        %v740 = vunpack.c.l.b16 %v708
        %v741 = vunpack.c.l.b16 %v709
        %v742 = vunpack.c.l.b16 %v710
        %v743 = vunpack.c.l.b16 %v711
        %v744 = vunpack.c.l.b16 %v712
        %v745 = vpack.c.b16 %v730, %v729
        %v746 = vpack.c.b16 %v732, %v731
        %v747 = vpack.c.b16 %v734, %v733
        %v748 = vpack.c.b16 %v736, %v735
        %v749 = vpack.c.b16 %v738, %v737
        %v750 = vpack.c.b16 %v740, %v739
        %v751 = vpack.c.b16 %v742, %v741
        %v752 = vpack.c.b16 %v744, %v743
        %761 = vmatprep.subr.bf16.mxu0 0
        %762 = vmatpush1.bf16.msra.mxu0 %v752
        %763 = vmatprep.subr.bf16.mxu0 0
        %764 = vmatpush1.bf16.msra.mxu0 %v751
        %765 = vmatprep.subr.bf16.mxu0 0
        %766 = vmatpush1.bf16.msra.mxu0 %v750
        %767 = vmatprep.subr.bf16.mxu0 0
        %768 = vmatpush1.bf16.msra.mxu0 %v749
        %769 = vmatprep.subr.bf16.mxu0 0
        %770 = vmatpush1.bf16.msra.mxu0 %v748
        %771 = vmatprep.subr.bf16.mxu0 0
        %772 = vmatpush1.bf16.msra.mxu0 %v747
        %773 = vmatprep.subr.bf16.mxu0 0
        %774 = vmatpush1.bf16.msra.mxu0 %v746
        %775 = vmatprep.subr.bf16.mxu0 0
        %776 = vmatpush1.bf16.msra.mxu0 %v745
        %777 = vmatprep.subr.bf16.mxu0 0
        %778 = vmatpush2.bf16.msra.mxu0 0
        %779 = vmatprep.subr.bf16.mxu0 0
        %780 = vmatpush2.bf16.msra.mxu0 0
        %781 = vmatprep.subr.bf16.mxu0 0
        %782 = vmatpush2.bf16.msra.mxu0 0
        %783 = vmatprep.subr.bf16.mxu0 0
        %784 = vmatpush2.bf16.msra.mxu0 0
        %785 = vmatprep.subr.bf16.mxu0 0
        %786 = vmatpush2.bf16.msra.mxu0 0
        %787 = vmatprep.subr.bf16.mxu0 0
        %788 = vmatpush2.bf16.msra.mxu0 0
        %789 = vmatprep.subr.bf16.mxu0 0
        %790 = vmatpush2.bf16.msra.mxu0 0
        %791 = vmatprep.subr.bf16.mxu0 0
        %792 = vmatpush2.bf16.msra.mxu0 0
        %793 = vmatprep.mubr.bf16.mxu0 0
        %794 = vmatmul.mubr.bf16.gmra.mxu0 %v695
        %v795 = vpop.f32.mrf.mxu0
        %v796 = vadd.f32 %v539, %v795
        %v797 = vpop.f32.mrf.mxu0
        %v798 = vpop.f32.mrf.mxu0
        %v799 = vadd.f32 %v540, %v798
        %v800 = vpop.f32.mrf.mxu0
        %801 = vdwg.mxu0
        %802 = vmatprep.subr.bf16.mxu0 0
        %803 = vmatpush1.bf16.msra.mxu0 %v752
        %804 = vmatprep.subr.bf16.mxu0 0
        %805 = vmatpush1.bf16.msra.mxu0 %v751
        %806 = vmatprep.subr.bf16.mxu0 0
        %807 = vmatpush1.bf16.msra.mxu0 %v750
        %808 = vmatprep.subr.bf16.mxu0 0
        %809 = vmatpush1.bf16.msra.mxu0 %v749
        %810 = vmatprep.subr.bf16.mxu0 0
        %811 = vmatpush1.bf16.msra.mxu0 %v748
        %812 = vmatprep.subr.bf16.mxu0 0
        %813 = vmatpush1.bf16.msra.mxu0 %v747
        %814 = vmatprep.subr.bf16.mxu0 0
        %815 = vmatpush1.bf16.msra.mxu0 %v746
        %816 = vmatprep.subr.bf16.mxu0 0
        %817 = vmatpush1.bf16.msra.mxu0 %v745
        %818 = vmatprep.subr.bf16.mxu0 0
        %819 = vmatpush2.bf16.msra.mxu0 0
        %820 = vmatprep.subr.bf16.mxu0 0
        %821 = vmatpush2.bf16.msra.mxu0 0
        %822 = vmatprep.subr.bf16.mxu0 0
        %823 = vmatpush2.bf16.msra.mxu0 0
        %824 = vmatprep.subr.bf16.mxu0 0
        %825 = vmatpush2.bf16.msra.mxu0 0
        %826 = vmatprep.subr.bf16.mxu0 0
        %827 = vmatpush2.bf16.msra.mxu0 0
        %828 = vmatprep.subr.bf16.mxu0 0
        %829 = vmatpush2.bf16.msra.mxu0 0
        %830 = vmatprep.subr.bf16.mxu0 0
        %831 = vmatpush2.bf16.msra.mxu0 0
        %832 = vmatprep.subr.bf16.mxu0 0
        %833 = vmatpush2.bf16.msra.mxu0 0
        %834 = vmatprep.mubr.bf16.mxu0 0
        %835 = vmatmul.mubr.bf16.gmra.mxu0 %v696
        %v836 = vpop.f32.mrf.mxu0
        %v837 = vadd.f32 %v541, %v836
        %v838 = vpop.f32.mrf.mxu0
        %v839 = vpop.f32.mrf.mxu0
        %v840 = vadd.f32 %v542, %v839
        %v841 = vpop.f32.mrf.mxu0
        %842 = vdwg.mxu0
        %v843 = vmax.f32 %v796, 0.0
        %v844 = vmax.f32 %v799, 0.0
        %v845 = vmax.f32 %v837, 0.0
        %v846 = vmax.f32 %v840, 0.0
        %v847 = vpack.c.bf16 %v844, %v843
        %v848 = vpack.c.bf16 %v846, %v845
        %v849 = vld [vmem:[#allocation10] sm:$0xf]
        %v850 = vld [vmem:[#allocation10 + $0x4] sm:$0xf]
        %v851 = vld [vmem:[#allocation10 + $0x8] sm:$0xf]
        %v852 = vld [vmem:[#allocation10 + $0xc] sm:$0xf]
        %v853 = vld [vmem:[#allocation10 + $0x10] sm:$0xf]
        %v854 = vld [vmem:[#allocation10 + $0x14] sm:$0xf]
        %v855 = vld [vmem:[#allocation10 + $0x18] sm:$0xf]
        %v856 = vld [vmem:[#allocation10 + $0x1c] sm:$0xf]
        %v857 = vld [vmem:[#allocation10 + $0x20] sm:$0xf]
        %v858 = vld [vmem:[#allocation10 + $0x24] sm:$0xf]
        %v859 = vld [vmem:[#allocation10 + $0x28] sm:$0xf]
        %v860 = vld [vmem:[#allocation10 + $0x2c] sm:$0xf]
        %v861 = vld [vmem:[#allocation10 + $0x30] sm:$0xf]
        %v862 = vld [vmem:[#allocation10 + $0x34] sm:$0xf]
        %v863 = vld [vmem:[#allocation10 + $0x38] sm:$0xf]
        %v864 = vld [vmem:[#allocation10 + $0x3c] sm:$0xf]
        %v881 = vunpack.c.l.b16 %v849
        %v882 = vunpack.c.l.b16 %v850
        %v883 = vunpack.c.l.b16 %v851
        %v884 = vunpack.c.l.b16 %v852
        %v885 = vunpack.c.l.b16 %v853
        %v886 = vunpack.c.l.b16 %v854
        %v887 = vunpack.c.l.b16 %v855
        %v888 = vunpack.c.l.b16 %v856
        %v889 = vunpack.c.l.b16 %v857
        %v890 = vunpack.c.l.b16 %v858
        %v891 = vunpack.c.l.b16 %v859
        %v892 = vunpack.c.l.b16 %v860
        %v893 = vunpack.c.l.b16 %v861
        %v894 = vunpack.c.l.b16 %v862
        %v895 = vunpack.c.l.b16 %v863
        %v896 = vunpack.c.l.b16 %v864
        %v897 = vpack.c.b16 %v882, %v881
        %v898 = vpack.c.b16 %v884, %v883
        %v899 = vpack.c.b16 %v886, %v885
        %v900 = vpack.c.b16 %v888, %v887
        %v901 = vpack.c.b16 %v890, %v889
        %v902 = vpack.c.b16 %v892, %v891
        %v903 = vpack.c.b16 %v894, %v893
        %v904 = vpack.c.b16 %v896, %v895
        %913 = vmatprep.subr.bf16.mxu0 0
        %914 = vmatpush1.bf16.msra.mxu0 %v904
        %915 = vmatprep.subr.bf16.mxu0 0
        %916 = vmatpush1.bf16.msra.mxu0 %v903
        %917 = vmatprep.subr.bf16.mxu0 0
        %918 = vmatpush1.bf16.msra.mxu0 %v902
        %919 = vmatprep.subr.bf16.mxu0 0
        %920 = vmatpush1.bf16.msra.mxu0 %v901
        %921 = vmatprep.subr.bf16.mxu0 0
        %922 = vmatpush1.bf16.msra.mxu0 %v900
        %923 = vmatprep.subr.bf16.mxu0 0
        %924 = vmatpush1.bf16.msra.mxu0 %v899
        %925 = vmatprep.subr.bf16.mxu0 0
        %926 = vmatpush1.bf16.msra.mxu0 %v898
        %927 = vmatprep.subr.bf16.mxu0 0
        %928 = vmatpush1.bf16.msra.mxu0 %v897
        %929 = vmatprep.subr.bf16.mxu0 0
        %930 = vmatpush2.bf16.msra.mxu0 0
        %931 = vmatprep.subr.bf16.mxu0 0
        %932 = vmatpush2.bf16.msra.mxu0 0
        %933 = vmatprep.subr.bf16.mxu0 0
        %934 = vmatpush2.bf16.msra.mxu0 0
        %935 = vmatprep.subr.bf16.mxu0 0
        %936 = vmatpush2.bf16.msra.mxu0 0
        %937 = vmatprep.subr.bf16.mxu0 0
        %938 = vmatpush2.bf16.msra.mxu0 0
        %939 = vmatprep.subr.bf16.mxu0 0
        %940 = vmatpush2.bf16.msra.mxu0 0
        %941 = vmatprep.subr.bf16.mxu0 0
        %942 = vmatpush2.bf16.msra.mxu0 0
        %943 = vmatprep.subr.bf16.mxu0 0
        %944 = vmatpush2.bf16.msra.mxu0 0
        %945 = vmatprep.mubr.bf16.mxu0 0
        %946 = vmatmul.mubr.bf16.gmra.mxu0 %v847
        %v947 = vpop.f32.mrf.mxu0
        %v948 = vadd.f32 0.0, %v947
        %v949 = vpop.f32.mrf.mxu0
        %v950 = vpop.f32.mrf.mxu0
        %v951 = vadd.f32 0.0, %v950
        %v952 = vpop.f32.mrf.mxu0
        %953 = vdwg.mxu0
        %v954 = vsub.f32 0.0, %v948
        %v955 = vsub.f32 0.0, %v951
        %v956 = vmul.f32 %v954, 1.442695
        %v957 = vpow.pop %v956
        %v958 = vmul.f32 %v955, 1.442695
        %v959 = vpow.pop %v958
        %v960 = vadd.f32 %v957, 1.0
        %v961 = vadd.f32 %v959, 1.0
        %v962 = vrcp.pop %v960
        %v963 = vrcp.pop %v961
        %964 = vst [vmem:[%s301] sm:$0xff] %v962
        %965 = vst [vmem:[%s301 + $0x8] sm:$0xff] %v963
        %966 = vmatprep.subr.bf16.mxu0 0
        %967 = vmatpush1.bf16.msra.mxu0 %v904
        %968 = vmatprep.subr.bf16.mxu0 0
        %969 = vmatpush1.bf16.msra.mxu0 %v903
        %970 = vmatprep.subr.bf16.mxu0 0
        %971 = vmatpush1.bf16.msra.mxu0 %v902
        %972 = vmatprep.subr.bf16.mxu0 0
        %973 = vmatpush1.bf16.msra.mxu0 %v901
        %974 = vmatprep.subr.bf16.mxu0 0
        %975 = vmatpush1.bf16.msra.mxu0 %v900
        %976 = vmatprep.subr.bf16.mxu0 0
        %977 = vmatpush1.bf16.msra.mxu0 %v899
        %978 = vmatprep.subr.bf16.mxu0 0
        %979 = vmatpush1.bf16.msra.mxu0 %v898
        %980 = vmatprep.subr.bf16.mxu0 0
        %981 = vmatpush1.bf16.msra.mxu0 %v897
        %982 = vmatprep.subr.bf16.mxu0 0
        %983 = vmatpush2.bf16.msra.mxu0 0
        %984 = vmatprep.subr.bf16.mxu0 0
        %985 = vmatpush2.bf16.msra.mxu0 0
        %986 = vmatprep.subr.bf16.mxu0 0
        %987 = vmatpush2.bf16.msra.mxu0 0
        %988 = vmatprep.subr.bf16.mxu0 0
        %989 = vmatpush2.bf16.msra.mxu0 0
        %990 = vmatprep.subr.bf16.mxu0 0
        %991 = vmatpush2.bf16.msra.mxu0 0
        %992 = vmatprep.subr.bf16.mxu0 0
        %993 = vmatpush2.bf16.msra.mxu0 0
        %994 = vmatprep.subr.bf16.mxu0 0
        %995 = vmatpush2.bf16.msra.mxu0 0
        %996 = vmatprep.subr.bf16.mxu0 0
        %997 = vmatpush2.bf16.msra.mxu0 0
        %998 = vmatprep.mubr.bf16.mxu0 0
        %999 = vmatmul.mubr.bf16.gmra.mxu0 %v848
        %v1000 = vpop.f32.mrf.mxu0
        %v1001 = vadd.f32 0.0, %v1000
        %v1002 = vpop.f32.mrf.mxu0
        %v1003 = vpop.f32.mrf.mxu0
        %v1004 = vadd.f32 0.0, %v1003
        %v1005 = vpop.f32.mrf.mxu0
        %1006 = vdwg.mxu0
        %v1007 = vsub.f32 0.0, %v1001
        %v1008 = vsub.f32 0.0, %v1004
        %v1009 = vmul.f32 %v1007, 1.442695
        %v1010 = vpow.pop %v1009
        %v1011 = vmul.f32 %v1008, 1.442695
        %v1012 = vpow.pop %v1011
        %v1013 = vadd.f32 %v1010, 1.0
        %v1014 = vadd.f32 %v1012, 1.0
        %v1015 = vrcp.pop %v1013
        %v1016 = vrcp.pop %v1014
        %1017 = vst [vmem:[%s301 + $0x10] sm:$0xff] %v1015
        %1018 = vst [vmem:[%s301 + $0x18] sm:$0xff] %v1016
        %s1019 = sand.u32 %s142, 1
        %s1020 = scalar_lea.sflag [#allocation4], %s1019
        %s1021 = sand.u32 %s142, 1
        %s1022 = smul.addr %s1021, 32
        %s1023 = scalar_lea.vmem [#allocation11], %s1022
        // Predicated region
        $region61: #{tpu_custom_call.1} parent=39 // pred_check
          %p1024 = pneg %p152
        $region62: #{tpu_custom_call.1} parent=39 // pred_check_branch
          %1026 = sbr.rel (%p1024) target = $region64
        $region63: #{tpu_custom_call.1} parent=39 // pred_region
          %s1027 = smul.u32 4, %s24
          %s1029 = ssub.s32 512, 512
          %1030 = vsyncadd %s1020, %s1029
          %s1031 = smul.addr %s1027, 128
          %s1032 = scalar_lea.hbm %s5, %s1031
          %s1033 = sshll.u32 %s1023, 4
          %s1034 = int_to_ptr.vmem [resolvable:$true] %s1033
          %1039 = dma.vmem_to_hbm [thread:$0]  %s1034, 512, %s1032, %s1020, 128, 128, 8
        $region64: #{tpu_custom_call.1} parent=39 // pred_fallthru
          _
      $region40: #{tpu_custom_call.1} parent=5 // pred_fallthru
        _
      %p1040 = scmp.le.s32.totalorder 2, %s19
      // Predicated region
      $region65: #{tpu_custom_call.1} parent=5 // pred_check
        %p1041 = pneg %p1040
      $region66: #{tpu_custom_call.1} parent=5 // pred_check_branch
        %1043 = sbr.rel (%p1041) target = $region68
      $region67: #{tpu_custom_call.1} parent=5 // pred_region
        %s1044 = ssub.s32 %s19, 2
        // Predicated region
        $region69: #{tpu_custom_call.1} parent=67 // pred_check
          %p1045 = pneg %p158
        $region70: #{tpu_custom_call.1} parent=67 // pred_check_branch
          %1047 = sbr.rel (%p1045) target = $region72
        $region71: #{tpu_custom_call.1} parent=67 // pred_region
          %s1048 = sand.u32 %s143, 1
          %s1049 = scalar_lea.sflag [#allocation4], %s1048
          %s1050 = sand.u32 %s143, 1
          %s1051 = smul.addr %s1050, 32
          %s1052 = scalar_lea.vmem [#allocation11], %s1051
          %1053 = dma.done %s1049, 512
        $region72: #{tpu_custom_call.1} parent=67 // pred_fallthru
          _
      $region68: #{tpu_custom_call.1} parent=5 // pred_fallthru
        _
    $region6: #{tpu_custom_call.1} parent=1 // loop_footer
      %s23 = sadd.s32 1, %s19
    $region7: #{tpu_custom_call.1} parent=1 // loop_footer_branch
      %18 = sbr.rel target = $region3
    $region8: #{tpu_custom_call.1} parent=1 // loop_exit
      _
    %1054 = vsyncpa [#allocation3], 1
    %s1055 = scalar_lea.sflag [#allocation3], 1
    %1056 = vsyncpa %s1055, 1
    %1057 = vsyncpa [#allocation6], 1
    %1058 = vsyncpa [#allocation9], 1
    %1059 = vsyncpa [#allocation4], 1
    %s1060 = scalar_lea.sflag [#allocation4], 1
    %1061 = vsyncpa %s1060, 1

// kernel: tpu_custom_call.1
$region0: #{tpu_custom_call.1}
  #allocation0 [shape = 'u32[]', space=smem, size = 0x4, offset = 0x4, fixed_abs, tag = 'smem constant byte address 0x4 - core index']
  #allocation1 [shape = 'u32[144,128]{1,0:T(1,128)}', space=vmem, size = 0x12000, scoped, tag = 'internal scratch']
  %s0 = inlined_call_operand.hbm [shape: bf16[64,256], index: 0, kind: input, shape index: {}]
  %s1 = inlined_call_operand.hbm [shape: bf16[256,128], index: 1, kind: input, shape index: {}]
  %s2 = inlined_call_operand.hbm [shape: bf16[128,128], index: 2, kind: input, shape index: {}]
  %s3 = inlined_call_operand.hbm [shape: bf16[128,128], index: 3, kind: input, shape index: {}]
  %s4 = inlined_call_operand.hbm [shape: bf16[128,128], index: 4, kind: input, shape index: {}]
  %s5 = inlined_call_operand.hbm [shape: f32[64,128], index: 5, kind: output, shape index: {}]
  %s6 = sld [smem:[#allocation0]]
  $region73: #{tpu_custom_call.1} parent=0
    _
  %s8 = ssub.s32 1, %s6
  %s9 = scalar_select 0, %s8, %s6
  $region1: #{tpu_custom_call.1} parent=0
    #allocation2 [shape = 'u8[32768]{0}', space=vmem, size = 0x8000, scoped, tag = 'input window, operand 0']
    #allocation3 [shape = 's32[2]{0}', space=sflag, size = 0x8, scoped, tag = 'scoped memory for tpu_custom_call.1']
    #allocation4 [shape = 's32[2]{0}', space=sflag, size = 0x8, scoped, tag = 'scoped memory for tpu_custom_call.1']
    #allocation5 [shape = 'u8[65536]{0}', space=vmem, size = 0x10000, scoped, tag = 'input window, operand 1, single buffered']
    #allocation6 [shape = 's32[1]{0}', space=sflag, size = 0x4, scoped, tag = 'scoped memory for tpu_custom_call.1']
    #allocation7 [shape = 'u8[32768]{0}', space=vmem, size = 0x8000, scoped, tag = 'input window, operand 2, single buffered']
    #allocation8 [shape = 'u8[32768]{0}', space=vmem, size = 0x8000, scoped, tag = 'input window, operand 3, single buffered']
    #allocation9 [shape = 's32[1]{0}', space=sflag, size = 0x4, scoped, tag = 'scoped memory for tpu_custom_call.1']
    #allocation10 [shape = 'u8[32768]{0}', space=vmem, size = 0x8000, scoped, tag = 'input window, operand 4, single buffered']
    #allocation11 [shape = 'u8[32768]{0}', space=vmem, size = 0x8000, scoped, tag = 'output window, operand 0']
    %10 = vsyncpa [#allocation3], 0
    %s11 = scalar_lea.sflag [#allocation3], 1
    %12 = vsyncpa %s11, 0
    %13 = vsyncpa [#allocation6], 0
    %14 = vsyncpa [#allocation9], 0
    %15 = vsyncpa [#allocation4], 0
    %s16 = scalar_lea.sflag [#allocation4], 1
    %17 = vsyncpa %s16, 0
    loop: start=0, step=1, limit=4
    $region2: #{tpu_custom_call.1} parent=1 // loop_pre_header
      _
    $region3: #{tpu_custom_call.1} parent=1 // loop_header
      %s19 = sphi 0, %s23
      %p20 = scmp.ge.s32.totalorder %s19, 4
      %s29 = sphi 0, %s31
      %s32 = sphi 0, %s29
      %s33 = sphi 0, %s32
      %s49 = sphi 0, %s33
      %s53 = sphi 0, %s53
      %s55 = sphi 0, %s53
      %s56 = sphi 0, %s55
      %s70 = sphi 0, %s56
      %s74 = sphi 0, %s74
      %s76 = sphi 0, %s74
      %s77 = sphi 0, %s76
      %s91 = sphi 0, %s77
      %s95 = sphi 0, %s95
      %s97 = sphi 0, %s95
      %s98 = sphi 0, %s97
      %s112 = sphi 0, %s98
      %s116 = sphi 0, %s116
      %s118 = sphi 0, %s116
      %s119 = sphi 0, %s118
      %s133 = sphi 0, %s119
      %s139 = sphi 0, %s141
      %s142 = sphi 0, %s139
      %s143 = sphi 0, %s142
      %s159 = sphi 0, %s143
    $region4: #{tpu_custom_call.1} parent=1 // loop_header_branch
      %22 = sbr.rel (%p20) target = $region8
    $region5: #{tpu_custom_call.1} parent=1 // loop_body
      %s24 = ssub.s32 %s19, 1
      %s25 = ssub.s32 %s19, 2
      %s26 = sadd.s32 %s19, 1
      %s27 = ssub.s32 %s19, %s26
      %p28 = scmp.eq.s32.totalorder %s27, 0
      %s30 = sadd.s32 %s29, 1
      %s31 = scalar_select %p28, %s29, %s30
      %p34 = pneg %p28
      %p35 = scmp.eq.s32.totalorder %s19, 1
      %p36 = por %p34, %p35
      %p37 = scmp.ne.s32.totalorder %s29, %s32
      %p38 = scmp.eq.s32.totalorder %s19, 0
      %p39 = por %p37, %p38
      %p40 = scmp.ne.s32.totalorder %s29, %s32
      %p41 = scmp.eq.s32.totalorder %s24, 1
      %p42 = por %p40, %p41
      %p43 = scmp.ne.s32.totalorder %s32, %s33
      %p44 = scmp.eq.s32.totalorder %s24, 0
      %p45 = por %p43, %p44
      %p46 = scmp.ne.s32.totalorder %s32, %s33
      %p47 = scmp.eq.s32.totalorder %s25, 1
      %p48 = por %p46, %p47
      %p50 = scmp.ne.s32.totalorder %s33, %s49
      %p51 = scmp.eq.s32.totalorder %s25, 0
      %p52 = por %p50, %p51
      %s54 = sadd.s32 %s53, 1
      %p57 = scmp.eq.s32.totalorder %s19, 1
      %p58 = scmp.ne.s32.totalorder %s53, %s55
      %p59 = scmp.eq.s32.totalorder %s19, 0
      %p60 = por %p58, %p59
      %p61 = scmp.ne.s32.totalorder %s53, %s55
      %p62 = scmp.eq.s32.totalorder %s24, 1
      %p63 = por %p61, %p62
      %p64 = scmp.ne.s32.totalorder %s55, %s56
      %p65 = scmp.eq.s32.totalorder %s24, 0
      %p66 = por %p64, %p65
      %p67 = scmp.ne.s32.totalorder %s55, %s56
      %p68 = scmp.eq.s32.totalorder %s25, 1
      %p69 = por %p67, %p68
      %p71 = scmp.ne.s32.totalorder %s56, %s70
      %p72 = scmp.eq.s32.totalorder %s25, 0
      %p73 = por %p71, %p72
      %s75 = sadd.s32 %s74, 1
      %p78 = scmp.eq.s32.totalorder %s19, 1
      %p79 = scmp.ne.s32.totalorder %s74, %s76
      %p80 = scmp.eq.s32.totalorder %s19, 0
      %p81 = por %p79, %p80
      %p82 = scmp.ne.s32.totalorder %s74, %s76
      %p83 = scmp.eq.s32.totalorder %s24, 1
      %p84 = por %p82, %p83
      %p85 = scmp.ne.s32.totalorder %s76, %s77
      %p86 = scmp.eq.s32.totalorder %s24, 0
      %p87 = por %p85, %p86
      %p88 = scmp.ne.s32.totalorder %s76, %s77
      %p89 = scmp.eq.s32.totalorder %s25, 1
      %p90 = por %p88, %p89
      %p92 = scmp.ne.s32.totalorder %s77, %s91
      %p93 = scmp.eq.s32.totalorder %s25, 0
      %p94 = por %p92, %p93
      %s96 = sadd.s32 %s95, 1
      %p99 = scmp.eq.s32.totalorder %s19, 1
      %p100 = scmp.ne.s32.totalorder %s95, %s97
      %p101 = scmp.eq.s32.totalorder %s19, 0
      %p102 = por %p100, %p101
      %p103 = scmp.ne.s32.totalorder %s95, %s97
      %p104 = scmp.eq.s32.totalorder %s24, 1
      %p105 = por %p103, %p104
      %p106 = scmp.ne.s32.totalorder %s97, %s98
      %p107 = scmp.eq.s32.totalorder %s24, 0
      %p108 = por %p106, %p107
      %p109 = scmp.ne.s32.totalorder %s97, %s98
      %p110 = scmp.eq.s32.totalorder %s25, 1
      %p111 = por %p109, %p110
      %p113 = scmp.ne.s32.totalorder %s98, %s112
      %p114 = scmp.eq.s32.totalorder %s25, 0
      %p115 = por %p113, %p114
      %s117 = sadd.s32 %s116, 1
      %p120 = scmp.eq.s32.totalorder %s19, 1
      %p121 = scmp.ne.s32.totalorder %s116, %s118
      %p122 = scmp.eq.s32.totalorder %s19, 0
      %p123 = por %p121, %p122
      %p124 = scmp.ne.s32.totalorder %s116, %s118
      %p125 = scmp.eq.s32.totalorder %s24, 1
      %p126 = por %p124, %p125
      %p127 = scmp.ne.s32.totalorder %s118, %s119
      %p128 = scmp.eq.s32.totalorder %s24, 0
      %p129 = por %p127, %p128
      %p130 = scmp.ne.s32.totalorder %s118, %s119
      %p131 = scmp.eq.s32.totalorder %s25, 1
      %p132 = por %p130, %p131
      %p134 = scmp.ne.s32.totalorder %s119, %s133
      %p135 = scmp.eq.s32.totalorder %s25, 0
      %p136 = por %p134, %p135
      %s137 = ssub.s32 %s19, %s26
      %p138 = scmp.eq.s32.totalorder %s137, 0
      %s140 = sadd.s32 %s139, 1
      %s141 = scalar_select %p138, %s139, %s140
      %p144 = pneg %p138
      %p145 = scmp.eq.s32.totalorder %s19, 1
      %p146 = por %p144, %p145
      %p147 = scmp.ne.s32.totalorder %s139, %s142
      %p148 = scmp.eq.s32.totalorder %s19, 0
      %p149 = por %p147, %p148
      %p150 = scmp.ne.s32.totalorder %s139, %s142
      %p151 = scmp.eq.s32.totalorder %s24, 1
      %p152 = por %p150, %p151
      %p153 = scmp.ne.s32.totalorder %s142, %s143
      %p154 = scmp.eq.s32.totalorder %s24, 0
      %p155 = por %p153, %p154
      %p156 = scmp.ne.s32.totalorder %s142, %s143
      %p157 = scmp.eq.s32.totalorder %s25, 1
      %p158 = por %p156, %p157
      %p160 = scmp.ne.s32.totalorder %s143, %s159
      %p161 = scmp.eq.s32.totalorder %s25, 0
      %p162 = por %p160, %p161
      %p163 = scmp.le.s32.totalorder 1, %s19
      %p164 = scmp.lt.s32.totalorder %s19, 3
      %p165 = pnand %p163, %p164
      %p166 = pneg %p165
      // Predicated region
      $region9: #{tpu_custom_call.1} parent=5 // pred_check
        _
      $region10: #{tpu_custom_call.1} parent=5 // pred_check_branch
        %168 = sbr.rel (%p165) target = $region12
      $region11: #{tpu_custom_call.1} parent=5 // pred_region
        %s169 = ssub.s32 %s19, 1
        // Predicated region
        $region13: #{tpu_custom_call.1} parent=11 // pred_check
          %p170 = pneg %p66
        $region14: #{tpu_custom_call.1} parent=11 // pred_check_branch
          %172 = sbr.rel (%p170) target = $region16
        $region15: #{tpu_custom_call.1} parent=11 // pred_region
          %s174 = ssub.s32 2048, 2048
          %175 = vsyncadd [#allocation6], %s174
          %s176 = sshll.u32 [#allocation5], 4
          %s177 = int_to_ptr.vmem [resolvable:$true] %s176
          %182 = dma.hbm_to_vmem [thread:$0]  %s1, 2048, %s177, [#allocation6], 64, 64, 4
        $region16: #{tpu_custom_call.1} parent=11 // pred_fallthru
          _
        // Predicated region
        $region17: #{tpu_custom_call.1} parent=11 // pred_check
          %p183 = pneg %p87
        $region18: #{tpu_custom_call.1} parent=11 // pred_check_branch
          %185 = sbr.rel (%p183) target = $region20
        $region19: #{tpu_custom_call.1} parent=11 // pred_region
          %s187 = ssub.s32 1024, 1024
          %188 = vsyncadd [#allocation6], %s187
          %s189 = sshll.u32 [#allocation7], 4
          %s190 = int_to_ptr.vmem [resolvable:$true] %s189
          %195 = dma.hbm_to_vmem [thread:$0]  %s2, 1024, %s190, [#allocation6], 64, 64, 4
        $region20: #{tpu_custom_call.1} parent=11 // pred_fallthru
          _
        // Predicated region
        $region21: #{tpu_custom_call.1} parent=11 // pred_check
          %p196 = pneg %p108
        $region22: #{tpu_custom_call.1} parent=11 // pred_check_branch
          %198 = sbr.rel (%p196) target = $region24
        $region23: #{tpu_custom_call.1} parent=11 // pred_region
          %s200 = ssub.s32 1024, 1024
          %201 = vsyncadd [#allocation9], %s200
          %s202 = sshll.u32 [#allocation8], 4
          %s203 = int_to_ptr.vmem [resolvable:$true] %s202
          %208 = dma.hbm_to_vmem [thread:$0]  %s3, 1024, %s203, [#allocation9], 64, 64, 4
        $region24: #{tpu_custom_call.1} parent=11 // pred_fallthru
          _
        // Predicated region
        $region25: #{tpu_custom_call.1} parent=11 // pred_check
          %p209 = pneg %p129
        $region26: #{tpu_custom_call.1} parent=11 // pred_check_branch
          %211 = sbr.rel (%p209) target = $region28
        $region27: #{tpu_custom_call.1} parent=11 // pred_region
          %s213 = ssub.s32 1024, 1024
          %214 = vsyncadd [#allocation9], %s213
          %s215 = sshll.u32 [#allocation10], 4
          %s216 = int_to_ptr.vmem [resolvable:$true] %s215
          %221 = dma.hbm_to_vmem [thread:$0]  %s4, 1024, %s216, [#allocation9], 64, 64, 4
        $region28: #{tpu_custom_call.1} parent=11 // pred_fallthru
          _
      $region12: #{tpu_custom_call.1} parent=5 // pred_fallthru
        _
      %p222 = scmp.lt.s32.totalorder %s19, 2
      // Predicated region
      $region29: #{tpu_custom_call.1} parent=5 // pred_check
        %p223 = pneg %p222
      $region30: #{tpu_custom_call.1} parent=5 // pred_check_branch
        %225 = sbr.rel (%p223) target = $region32
      $region31: #{tpu_custom_call.1} parent=5 // pred_region
        // Predicated region
        $region33: #{tpu_custom_call.1} parent=31 // pred_check
          %p226 = pneg %p39
        $region34: #{tpu_custom_call.1} parent=31 // pred_check_branch
          %228 = sbr.rel (%p226) target = $region36
        $region35: #{tpu_custom_call.1} parent=31 // pred_region
          %s229 = sand.u32 %s29, 1
          %s230 = scalar_lea.sflag [#allocation3], %s229
          %s231 = sand.u32 %s29, 1
          %s232 = smul.addr %s231, 32
          %s233 = scalar_lea.vmem [#allocation2], %s232
          %s234 = smul.u32 4, %s19
          %s236 = ssub.s32 512, 512
          %237 = vsyncadd %s230, %s236
          %s238 = smul.addr %s234, 2
          %s239 = smul.addr %s238, 64
          %s240 = scalar_lea.hbm %s0, %s239
          %s241 = sshll.u32 %s233, 4
          %s242 = int_to_ptr.vmem [resolvable:$true] %s241
          %247 = dma.hbm_to_vmem [thread:$0]  %s240, 512, %s242, %s230, 128, 128, 8
        $region36: #{tpu_custom_call.1} parent=31 // pred_fallthru
          _
      $region32: #{tpu_custom_call.1} parent=5 // pred_fallthru
        _
      %p248 = scmp.le.s32.totalorder 1, %s19
      %p249 = scmp.lt.s32.totalorder %s19, 3
      %p250 = pnand %p248, %p249
      %p251 = pneg %p250
      // Predicated region
      $region37: #{tpu_custom_call.1} parent=5 // pred_check
        _
      $region38: #{tpu_custom_call.1} parent=5 // pred_check_branch
        %253 = sbr.rel (%p250) target = $region40
      $region39: #{tpu_custom_call.1} parent=5 // pred_region
        %s254 = ssub.s32 %s19, 1
        %s255 = sand.u32 %s32, 1
        %s256 = scalar_lea.sflag [#allocation3], %s255
        %s257 = sand.u32 %s32, 1
        %s258 = smul.addr %s257, 32
        %s259 = scalar_lea.vmem [#allocation2], %s258
        // Predicated region
        $region41: #{tpu_custom_call.1} parent=39 // pred_check
          %p260 = pneg %p45
        $region42: #{tpu_custom_call.1} parent=39 // pred_check_branch
          %262 = sbr.rel (%p260) target = $region44
        $region43: #{tpu_custom_call.1} parent=39 // pred_region
          %263 = dma.done %s256, 512
        $region44: #{tpu_custom_call.1} parent=39 // pred_fallthru
          _
        // Predicated region
        $region45: #{tpu_custom_call.1} parent=39 // pred_check
          %p264 = pneg %p66
        $region46: #{tpu_custom_call.1} parent=39 // pred_check_branch
          %266 = sbr.rel (%p264) target = $region48
        $region47: #{tpu_custom_call.1} parent=39 // pred_region
          %267 = dma.done [#allocation6], 2048
        $region48: #{tpu_custom_call.1} parent=39 // pred_fallthru
          _
        // Predicated region
        $region49: #{tpu_custom_call.1} parent=39 // pred_check
          %p268 = pneg %p87
        $region50: #{tpu_custom_call.1} parent=39 // pred_check_branch
          %270 = sbr.rel (%p268) target = $region52
        $region51: #{tpu_custom_call.1} parent=39 // pred_region
          %271 = dma.done [#allocation6], 1024
        $region52: #{tpu_custom_call.1} parent=39 // pred_fallthru
          _
        // Predicated region
        $region53: #{tpu_custom_call.1} parent=39 // pred_check
          %p272 = pneg %p108
        $region54: #{tpu_custom_call.1} parent=39 // pred_check_branch
          %274 = sbr.rel (%p272) target = $region56
        $region55: #{tpu_custom_call.1} parent=39 // pred_region
          %275 = dma.done [#allocation9], 1024
        $region56: #{tpu_custom_call.1} parent=39 // pred_fallthru
          _
        // Predicated region
        $region57: #{tpu_custom_call.1} parent=39 // pred_check
          %p276 = pneg %p129
        $region58: #{tpu_custom_call.1} parent=39 // pred_check_branch
          %278 = sbr.rel (%p276) target = $region60
        $region59: #{tpu_custom_call.1} parent=39 // pred_region
          %279 = dma.done [#allocation9], 1024
        $region60: #{tpu_custom_call.1} parent=39 // pred_fallthru
          _
        %s280 = sand.u32 %s32, 1
        %s281 = scalar_lea.sflag [#allocation3], %s280
        %s282 = sand.u32 %s32, 1
        %s283 = smul.addr %s282, 32
        %s284 = scalar_lea.vmem [#allocation2], %s283
        %p285 = pneg %p45
        %p286 = pneg %p42
        %p287 = pneg %p66
        %p288 = pneg %p63
        %p289 = pneg %p87
        %p290 = pneg %p84
        %p291 = pneg %p108
        %p292 = pneg %p105
        %p293 = pneg %p129
        %p294 = pneg %p126
        %p295 = pneg %p155
        %p296 = pneg %p152
        %s297 = sand.u32 %s142, 1
        %s298 = scalar_lea.sflag [#allocation4], %s297
        %s299 = sand.u32 %s142, 1
        %s300 = smul.addr %s299, 32
        %s301 = scalar_lea.vmem [#allocation11], %s300
        %s302 = smul.u32 4, %s24
        %s303 = smul.u32 4, %s24
        %v305 = vld [vmem:[%s259] sm:$0xff]
        %v306 = vld [vmem:[%s259 + $0x8] sm:$0xff]
        %v307 = vld [vmem:[%s259 + $0x10] sm:$0xff]
        %v308 = vld [vmem:[%s259 + $0x18] sm:$0xff]
        %v309 = vld [vmem:[#allocation5] sm:$0xf]
        %v310 = vld [vmem:[#allocation5 + $0x4] sm:$0xf]
        %v311 = vld [vmem:[#allocation5 + $0x8] sm:$0xf]
        %v312 = vld [vmem:[#allocation5 + $0xc] sm:$0xf]
        %v313 = vld [vmem:[#allocation5 + $0x10] sm:$0xf]
        %v314 = vld [vmem:[#allocation5 + $0x14] sm:$0xf]
        %v315 = vld [vmem:[#allocation5 + $0x18] sm:$0xf]
        %v316 = vld [vmem:[#allocation5 + $0x1c] sm:$0xf]
        %v317 = vld [vmem:[#allocation5 + $0x20] sm:$0xf]
        %v318 = vld [vmem:[#allocation5 + $0x24] sm:$0xf]
        %v319 = vld [vmem:[#allocation5 + $0x28] sm:$0xf]
        %v320 = vld [vmem:[#allocation5 + $0x2c] sm:$0xf]
        %v321 = vld [vmem:[#allocation5 + $0x30] sm:$0xf]
        %v322 = vld [vmem:[#allocation5 + $0x34] sm:$0xf]
        %v323 = vld [vmem:[#allocation5 + $0x38] sm:$0xf]
        %v324 = vld [vmem:[#allocation5 + $0x3c] sm:$0xf]
        %v325 = vld [vmem:[#allocation5 + $0x40] sm:$0xf]
        %v326 = vld [vmem:[#allocation5 + $0x44] sm:$0xf]
        %v327 = vld [vmem:[#allocation5 + $0x48] sm:$0xf]
        %v328 = vld [vmem:[#allocation5 + $0x4c] sm:$0xf]
        %v329 = vld [vmem:[#allocation5 + $0x50] sm:$0xf]
        %v330 = vld [vmem:[#allocation5 + $0x54] sm:$0xf]
        %v331 = vld [vmem:[#allocation5 + $0x58] sm:$0xf]
        %v332 = vld [vmem:[#allocation5 + $0x5c] sm:$0xf]
        %v333 = vld [vmem:[#allocation5 + $0x60] sm:$0xf]
        %v334 = vld [vmem:[#allocation5 + $0x64] sm:$0xf]
        %v335 = vld [vmem:[#allocation5 + $0x68] sm:$0xf]
        %v336 = vld [vmem:[#allocation5 + $0x6c] sm:$0xf]
        %v337 = vld [vmem:[#allocation5 + $0x70] sm:$0xf]
        %v338 = vld [vmem:[#allocation5 + $0x74] sm:$0xf]
        %v339 = vld [vmem:[#allocation5 + $0x78] sm:$0xf]
        %v340 = vld [vmem:[#allocation5 + $0x7c] sm:$0xf]
        %v343 = vunpack.c.l.b16 %v305
        %v344 = vunpack.c.h.b16 %v305
        %v345 = vunpack.c.l.b16 %v306
        %v346 = vunpack.c.h.b16 %v306
        %v347 = vpack.c.b16 %v345, %v343
        %v348 = vpack.c.b16 %v346, %v344
        %v383 = vunpack.c.l.b16 %v309
        %v384 = vunpack.c.l.b16 %v310
        %v385 = vunpack.c.l.b16 %v311
        %v386 = vunpack.c.l.b16 %v312
        %v387 = vunpack.c.l.b16 %v313
        %v388 = vunpack.c.l.b16 %v314
        %v389 = vunpack.c.l.b16 %v315
        %v390 = vunpack.c.l.b16 %v316
        %v391 = vunpack.c.l.b16 %v317
        %v392 = vunpack.c.l.b16 %v318
        %v393 = vunpack.c.l.b16 %v319
        %v394 = vunpack.c.l.b16 %v320
        %v395 = vunpack.c.l.b16 %v321
        %v396 = vunpack.c.l.b16 %v322
        %v397 = vunpack.c.l.b16 %v323
        %v398 = vunpack.c.l.b16 %v324
        %v399 = vunpack.c.l.b16 %v325
        %v400 = vunpack.c.l.b16 %v326
        %v401 = vunpack.c.l.b16 %v327
        %v402 = vunpack.c.l.b16 %v328
        %v403 = vunpack.c.l.b16 %v329
        %v404 = vunpack.c.l.b16 %v330
        %v405 = vunpack.c.l.b16 %v331
        %v406 = vunpack.c.l.b16 %v332
        %v407 = vunpack.c.l.b16 %v333
        %v408 = vunpack.c.l.b16 %v334
        %v409 = vunpack.c.l.b16 %v335
        %v410 = vunpack.c.l.b16 %v336
        %v411 = vunpack.c.l.b16 %v337
        %v412 = vunpack.c.l.b16 %v338
        %v413 = vunpack.c.l.b16 %v339
        %v414 = vunpack.c.l.b16 %v340
        %v415 = vpack.c.b16 %v384, %v383
        %v416 = vpack.c.b16 %v386, %v385
        %v417 = vpack.c.b16 %v388, %v387
        %v418 = vpack.c.b16 %v390, %v389
        %v419 = vpack.c.b16 %v392, %v391
        %v420 = vpack.c.b16 %v394, %v393
        %v421 = vpack.c.b16 %v396, %v395
        %v422 = vpack.c.b16 %v398, %v397
        %v423 = vpack.c.b16 %v400, %v399
        %v424 = vpack.c.b16 %v402, %v401
        %v425 = vpack.c.b16 %v404, %v403
        %v426 = vpack.c.b16 %v406, %v405
        %v427 = vpack.c.b16 %v408, %v407
        %v428 = vpack.c.b16 %v410, %v409
        %v429 = vpack.c.b16 %v412, %v411
        %v430 = vpack.c.b16 %v414, %v413
        %447 = vmatprep.subr.bf16.mxu0 0
        %448 = vmatpush1.bf16.msra.mxu0 %v422
        %449 = vmatprep.subr.bf16.mxu0 0
        %450 = vmatpush1.bf16.msra.mxu0 %v421
        %451 = vmatprep.subr.bf16.mxu0 0
        %452 = vmatpush1.bf16.msra.mxu0 %v420
        %453 = vmatprep.subr.bf16.mxu0 0
        %454 = vmatpush1.bf16.msra.mxu0 %v419
        %455 = vmatprep.subr.bf16.mxu0 0
        %456 = vmatpush1.bf16.msra.mxu0 %v418
        %457 = vmatprep.subr.bf16.mxu0 0
        %458 = vmatpush1.bf16.msra.mxu0 %v417
        %459 = vmatprep.subr.bf16.mxu0 0
        %460 = vmatpush1.bf16.msra.mxu0 %v416
        %461 = vmatprep.subr.bf16.mxu0 0
        %462 = vmatpush1.bf16.msra.mxu0 %v415
        %463 = vmatprep.subr.bf16.mxu0 0
        %464 = vmatpush2.bf16.msra.mxu0 %v430
        %465 = vmatprep.subr.bf16.mxu0 0
        %466 = vmatpush2.bf16.msra.mxu0 %v429
        %467 = vmatprep.subr.bf16.mxu0 0
        %468 = vmatpush2.bf16.msra.mxu0 %v428
        %469 = vmatprep.subr.bf16.mxu0 0
        %470 = vmatpush2.bf16.msra.mxu0 %v427
        %471 = vmatprep.subr.bf16.mxu0 0
        %472 = vmatpush2.bf16.msra.mxu0 %v426
        %473 = vmatprep.subr.bf16.mxu0 0
        %474 = vmatpush2.bf16.msra.mxu0 %v425
        %475 = vmatprep.subr.bf16.mxu0 0
        %476 = vmatpush2.bf16.msra.mxu0 %v424
        %477 = vmatprep.subr.bf16.mxu0 0
        %478 = vmatpush2.bf16.msra.mxu0 %v423
        %479 = vmatprep.mubr.bf16.mxu0 %v348
        %480 = vmatmul.mubr.bf16.gmra.mxu0 %v347
        %v481 = vpop.f32.mrf.mxu0
        %v482 = vadd.f32 0.0, %v481
        %v483 = vpop.f32.mrf.mxu0
        %v484 = vpop.f32.mrf.mxu0
        %v485 = vadd.f32 0.0, %v484
        %v486 = vpop.f32.mrf.mxu0
        %487 = vdwg.mxu0
        %v490 = vunpack.c.l.b16 %v307
        %v491 = vunpack.c.h.b16 %v307
        %v492 = vunpack.c.l.b16 %v308
        %v493 = vunpack.c.h.b16 %v308
        %v494 = vpack.c.b16 %v492, %v490
        %v495 = vpack.c.b16 %v493, %v491
        %498 = vmatprep.subr.bf16.mxu0 0
        %499 = vmatpush1.bf16.msra.mxu0 %v422
        %500 = vmatprep.subr.bf16.mxu0 0
        %501 = vmatpush1.bf16.msra.mxu0 %v421
        %502 = vmatprep.subr.bf16.mxu0 0
        %503 = vmatpush1.bf16.msra.mxu0 %v420
        %504 = vmatprep.subr.bf16.mxu0 0
        %505 = vmatpush1.bf16.msra.mxu0 %v419
        %506 = vmatprep.subr.bf16.mxu0 0
        %507 = vmatpush1.bf16.msra.mxu0 %v418
        %508 = vmatprep.subr.bf16.mxu0 0
        %509 = vmatpush1.bf16.msra.mxu0 %v417
        %510 = vmatprep.subr.bf16.mxu0 0
        %511 = vmatpush1.bf16.msra.mxu0 %v416
        %512 = vmatprep.subr.bf16.mxu0 0
        %513 = vmatpush1.bf16.msra.mxu0 %v415
        %514 = vmatprep.subr.bf16.mxu0 0
        %515 = vmatpush2.bf16.msra.mxu0 %v430
        %516 = vmatprep.subr.bf16.mxu0 0
        %517 = vmatpush2.bf16.msra.mxu0 %v429
        %518 = vmatprep.subr.bf16.mxu0 0
        %519 = vmatpush2.bf16.msra.mxu0 %v428
        %520 = vmatprep.subr.bf16.mxu0 0
        %521 = vmatpush2.bf16.msra.mxu0 %v427
        %522 = vmatprep.subr.bf16.mxu0 0
        %523 = vmatpush2.bf16.msra.mxu0 %v426
        %524 = vmatprep.subr.bf16.mxu0 0
        %525 = vmatpush2.bf16.msra.mxu0 %v425
        %526 = vmatprep.subr.bf16.mxu0 0
        %527 = vmatpush2.bf16.msra.mxu0 %v424
        %528 = vmatprep.subr.bf16.mxu0 0
        %529 = vmatpush2.bf16.msra.mxu0 %v423
        %530 = vmatprep.mubr.bf16.mxu0 %v495
        %531 = vmatmul.mubr.bf16.gmra.mxu0 %v494
        %v532 = vpop.f32.mrf.mxu0
        %v533 = vadd.f32 0.0, %v532
        %v534 = vpop.f32.mrf.mxu0
        %v535 = vpop.f32.mrf.mxu0
        %v536 = vadd.f32 0.0, %v535
        %v537 = vpop.f32.mrf.mxu0
        %538 = vdwg.mxu0
        %v539 = vmax.f32 %v482, 0.0
        %v540 = vmax.f32 %v485, 0.0
        %v541 = vmax.f32 %v533, 0.0
        %v542 = vmax.f32 %v536, 0.0
        %v543 = vpack.c.bf16 %v540, %v539
        %v544 = vpack.c.bf16 %v542, %v541
        %v545 = vld [vmem:[#allocation7] sm:$0xf]
        %v546 = vld [vmem:[#allocation7 + $0x4] sm:$0xf]
        %v547 = vld [vmem:[#allocation7 + $0x8] sm:$0xf]
        %v548 = vld [vmem:[#allocation7 + $0xc] sm:$0xf]
        %v549 = vld [vmem:[#allocation7 + $0x10] sm:$0xf]
        %v550 = vld [vmem:[#allocation7 + $0x14] sm:$0xf]
        %v551 = vld [vmem:[#allocation7 + $0x18] sm:$0xf]
        %v552 = vld [vmem:[#allocation7 + $0x1c] sm:$0xf]
        %v553 = vld [vmem:[#allocation7 + $0x20] sm:$0xf]
        %v554 = vld [vmem:[#allocation7 + $0x24] sm:$0xf]
        %v555 = vld [vmem:[#allocation7 + $0x28] sm:$0xf]
        %v556 = vld [vmem:[#allocation7 + $0x2c] sm:$0xf]
        %v557 = vld [vmem:[#allocation7 + $0x30] sm:$0xf]
        %v558 = vld [vmem:[#allocation7 + $0x34] sm:$0xf]
        %v559 = vld [vmem:[#allocation7 + $0x38] sm:$0xf]
        %v560 = vld [vmem:[#allocation7 + $0x3c] sm:$0xf]
        %v577 = vunpack.c.l.b16 %v545
        %v578 = vunpack.c.l.b16 %v546
        %v579 = vunpack.c.l.b16 %v547
        %v580 = vunpack.c.l.b16 %v548
        %v581 = vunpack.c.l.b16 %v549
        %v582 = vunpack.c.l.b16 %v550
        %v583 = vunpack.c.l.b16 %v551
        %v584 = vunpack.c.l.b16 %v552
        %v585 = vunpack.c.l.b16 %v553
        %v586 = vunpack.c.l.b16 %v554
        %v587 = vunpack.c.l.b16 %v555
        %v588 = vunpack.c.l.b16 %v556
        %v589 = vunpack.c.l.b16 %v557
        %v590 = vunpack.c.l.b16 %v558
        %v591 = vunpack.c.l.b16 %v559
        %v592 = vunpack.c.l.b16 %v560
        %v593 = vpack.c.b16 %v578, %v577
        %v594 = vpack.c.b16 %v580, %v579
        %v595 = vpack.c.b16 %v582, %v581
        %v596 = vpack.c.b16 %v584, %v583
        %v597 = vpack.c.b16 %v586, %v585
        %v598 = vpack.c.b16 %v588, %v587
        %v599 = vpack.c.b16 %v590, %v589
        %v600 = vpack.c.b16 %v592, %v591
        %609 = vmatprep.subr.bf16.mxu0 0
        %610 = vmatpush1.bf16.msra.mxu0 %v600
        %611 = vmatprep.subr.bf16.mxu0 0
        %612 = vmatpush1.bf16.msra.mxu0 %v599
        %613 = vmatprep.subr.bf16.mxu0 0
        %614 = vmatpush1.bf16.msra.mxu0 %v598
        %615 = vmatprep.subr.bf16.mxu0 0
        %616 = vmatpush1.bf16.msra.mxu0 %v597
        %617 = vmatprep.subr.bf16.mxu0 0
        %618 = vmatpush1.bf16.msra.mxu0 %v596
        %619 = vmatprep.subr.bf16.mxu0 0
        %620 = vmatpush1.bf16.msra.mxu0 %v595
        %621 = vmatprep.subr.bf16.mxu0 0
        %622 = vmatpush1.bf16.msra.mxu0 %v594
        %623 = vmatprep.subr.bf16.mxu0 0
        %624 = vmatpush1.bf16.msra.mxu0 %v593
        %625 = vmatprep.subr.bf16.mxu0 0
        %626 = vmatpush2.bf16.msra.mxu0 0
        %627 = vmatprep.subr.bf16.mxu0 0
        %628 = vmatpush2.bf16.msra.mxu0 0
        %629 = vmatprep.subr.bf16.mxu0 0
        %630 = vmatpush2.bf16.msra.mxu0 0
        %631 = vmatprep.subr.bf16.mxu0 0
        %632 = vmatpush2.bf16.msra.mxu0 0
        %633 = vmatprep.subr.bf16.mxu0 0
        %634 = vmatpush2.bf16.msra.mxu0 0
        %635 = vmatprep.subr.bf16.mxu0 0
        %636 = vmatpush2.bf16.msra.mxu0 0
        %637 = vmatprep.subr.bf16.mxu0 0
        %638 = vmatpush2.bf16.msra.mxu0 0
        %639 = vmatprep.subr.bf16.mxu0 0
        %640 = vmatpush2.bf16.msra.mxu0 0
        %641 = vmatprep.mubr.bf16.mxu0 0
        %642 = vmatmul.mubr.bf16.gmra.mxu0 %v543
        %v643 = vpop.f32.mrf.mxu0
        %v644 = vadd.f32 0.0, %v643
        %v645 = vpop.f32.mrf.mxu0
        %v646 = vpop.f32.mrf.mxu0
        %v647 = vadd.f32 0.0, %v646
        %v648 = vpop.f32.mrf.mxu0
        %649 = vdwg.mxu0
        %650 = vmatprep.subr.bf16.mxu0 0
        %651 = vmatpush1.bf16.msra.mxu0 %v600
        %652 = vmatprep.subr.bf16.mxu0 0
        %653 = vmatpush1.bf16.msra.mxu0 %v599
        %654 = vmatprep.subr.bf16.mxu0 0
        %655 = vmatpush1.bf16.msra.mxu0 %v598
        %656 = vmatprep.subr.bf16.mxu0 0
        %657 = vmatpush1.bf16.msra.mxu0 %v597
        %658 = vmatprep.subr.bf16.mxu0 0
        %659 = vmatpush1.bf16.msra.mxu0 %v596
        %660 = vmatprep.subr.bf16.mxu0 0
        %661 = vmatpush1.bf16.msra.mxu0 %v595
        %662 = vmatprep.subr.bf16.mxu0 0
        %663 = vmatpush1.bf16.msra.mxu0 %v594
        %664 = vmatprep.subr.bf16.mxu0 0
        %665 = vmatpush1.bf16.msra.mxu0 %v593
        %666 = vmatprep.subr.bf16.mxu0 0
        %667 = vmatpush2.bf16.msra.mxu0 0
        %668 = vmatprep.subr.bf16.mxu0 0
        %669 = vmatpush2.bf16.msra.mxu0 0
        %670 = vmatprep.subr.bf16.mxu0 0
        %671 = vmatpush2.bf16.msra.mxu0 0
        %672 = vmatprep.subr.bf16.mxu0 0
        %673 = vmatpush2.bf16.msra.mxu0 0
        %674 = vmatprep.subr.bf16.mxu0 0
        %675 = vmatpush2.bf16.msra.mxu0 0
        %676 = vmatprep.subr.bf16.mxu0 0
        %677 = vmatpush2.bf16.msra.mxu0 0
        %678 = vmatprep.subr.bf16.mxu0 0
        %679 = vmatpush2.bf16.msra.mxu0 0
        %680 = vmatprep.subr.bf16.mxu0 0
        %681 = vmatpush2.bf16.msra.mxu0 0
        %682 = vmatprep.mubr.bf16.mxu0 0
        %683 = vmatmul.mubr.bf16.gmra.mxu0 %v544
        %v684 = vpop.f32.mrf.mxu0
        %v685 = vadd.f32 0.0, %v684
        %v686 = vpop.f32.mrf.mxu0
        %v687 = vpop.f32.mrf.mxu0
        %v688 = vadd.f32 0.0, %v687
        %v689 = vpop.f32.mrf.mxu0
        %690 = vdwg.mxu0
        %v691 = vmax.f32 %v644, 0.0
        %v692 = vmax.f32 %v647, 0.0
        %v693 = vmax.f32 %v685, 0.0
        %v694 = vmax.f32 %v688, 0.0
        %v695 = vpack.c.bf16 %v692, %v691
        %v696 = vpack.c.bf16 %v694, %v693
        %v697 = vld [vmem:[#allocation8] sm:$0xf]
        %v698 = vld [vmem:[#allocation8 + $0x4] sm:$0xf]
        %v699 = vld [vmem:[#allocation8 + $0x8] sm:$0xf]
        %v700 = vld [vmem:[#allocation8 + $0xc] sm:$0xf]
        %v701 = vld [vmem:[#allocation8 + $0x10] sm:$0xf]
        %v702 = vld [vmem:[#allocation8 + $0x14] sm:$0xf]
        %v703 = vld [vmem:[#allocation8 + $0x18] sm:$0xf]
        %v704 = vld [vmem:[#allocation8 + $0x1c] sm:$0xf]
        %v705 = vld [vmem:[#allocation8 + $0x20] sm:$0xf]
        %v706 = vld [vmem:[#allocation8 + $0x24] sm:$0xf]
        %v707 = vld [vmem:[#allocation8 + $0x28] sm:$0xf]
        %v708 = vld [vmem:[#allocation8 + $0x2c] sm:$0xf]
        %v709 = vld [vmem:[#allocation8 + $0x30] sm:$0xf]
        %v710 = vld [vmem:[#allocation8 + $0x34] sm:$0xf]
        %v711 = vld [vmem:[#allocation8 + $0x38] sm:$0xf]
        %v712 = vld [vmem:[#allocation8 + $0x3c] sm:$0xf]
        %v729 = vunpack.c.l.b16 %v697
        %v730 = vunpack.c.l.b16 %v698
        %v731 = vunpack.c.l.b16 %v699
        %v732 = vunpack.c.l.b16 %v700
        %v733 = vunpack.c.l.b16 %v701
        %v734 = vunpack.c.l.b16 %v702
        %v735 = vunpack.c.l.b16 %v703
        %v736 = vunpack.c.l.b16 %v704
        %v737 = vunpack.c.l.b16 %v705
        %v738 = vunpack.c.l.b16 %v706
        %v739 = vunpack.c.l.b16 %v707
        %v740 = vunpack.c.l.b16 %v708
        %v741 = vunpack.c.l.b16 %v709
        %v742 = vunpack.c.l.b16 %v710
        %v743 = vunpack.c.l.b16 %v711
        %v744 = vunpack.c.l.b16 %v712
        %v745 = vpack.c.b16 %v730, %v729
        %v746 = vpack.c.b16 %v732, %v731
        %v747 = vpack.c.b16 %v734, %v733
        %v748 = vpack.c.b16 %v736, %v735
        %v749 = vpack.c.b16 %v738, %v737
        %v750 = vpack.c.b16 %v740, %v739
        %v751 = vpack.c.b16 %v742, %v741
        %v752 = vpack.c.b16 %v744, %v743
        %761 = vmatprep.subr.bf16.mxu0 0
        %762 = vmatpush1.bf16.msra.mxu0 %v752
        %763 = vmatprep.subr.bf16.mxu0 0
        %764 = vmatpush1.bf16.msra.mxu0 %v751
        %765 = vmatprep.subr.bf16.mxu0 0
        %766 = vmatpush1.bf16.msra.mxu0 %v750
        %767 = vmatprep.subr.bf16.mxu0 0
        %768 = vmatpush1.bf16.msra.mxu0 %v749
        %769 = vmatprep.subr.bf16.mxu0 0
        %770 = vmatpush1.bf16.msra.mxu0 %v748
        %771 = vmatprep.subr.bf16.mxu0 0
        %772 = vmatpush1.bf16.msra.mxu0 %v747
        %773 = vmatprep.subr.bf16.mxu0 0
        %774 = vmatpush1.bf16.msra.mxu0 %v746
        %775 = vmatprep.subr.bf16.mxu0 0
        %776 = vmatpush1.bf16.msra.mxu0 %v745
        %777 = vmatprep.subr.bf16.mxu0 0
        %778 = vmatpush2.bf16.msra.mxu0 0
        %779 = vmatprep.subr.bf16.mxu0 0
        %780 = vmatpush2.bf16.msra.mxu0 0
        %781 = vmatprep.subr.bf16.mxu0 0
        %782 = vmatpush2.bf16.msra.mxu0 0
        %783 = vmatprep.subr.bf16.mxu0 0
        %784 = vmatpush2.bf16.msra.mxu0 0
        %785 = vmatprep.subr.bf16.mxu0 0
        %786 = vmatpush2.bf16.msra.mxu0 0
        %787 = vmatprep.subr.bf16.mxu0 0
        %788 = vmatpush2.bf16.msra.mxu0 0
        %789 = vmatprep.subr.bf16.mxu0 0
        %790 = vmatpush2.bf16.msra.mxu0 0
        %791 = vmatprep.subr.bf16.mxu0 0
        %792 = vmatpush2.bf16.msra.mxu0 0
        %793 = vmatprep.mubr.bf16.mxu0 0
        %794 = vmatmul.mubr.bf16.gmra.mxu0 %v695
        %v795 = vpop.f32.mrf.mxu0
        %v796 = vadd.f32 %v539, %v795
        %v797 = vpop.f32.mrf.mxu0
        %v798 = vpop.f32.mrf.mxu0
        %v799 = vadd.f32 %v540, %v798
        %v800 = vpop.f32.mrf.mxu0
        %801 = vdwg.mxu0
        %802 = vmatprep.subr.bf16.mxu0 0
        %803 = vmatpush1.bf16.msra.mxu0 %v752
        %804 = vmatprep.subr.bf16.mxu0 0
        %805 = vmatpush1.bf16.msra.mxu0 %v751
        %806 = vmatprep.subr.bf16.mxu0 0
        %807 = vmatpush1.bf16.msra.mxu0 %v750
        %808 = vmatprep.subr.bf16.mxu0 0
        %809 = vmatpush1.bf16.msra.mxu0 %v749
        %810 = vmatprep.subr.bf16.mxu0 0
        %811 = vmatpush1.bf16.msra.mxu0 %v748
        %812 = vmatprep.subr.bf16.mxu0 0
        %813 = vmatpush1.bf16.msra.mxu0 %v747
        %814 = vmatprep.subr.bf16.mxu0 0
        %815 = vmatpush1.bf16.msra.mxu0 %v746
        %816 = vmatprep.subr.bf16.mxu0 0
        %817 = vmatpush1.bf16.msra.mxu0 %v745
        %818 = vmatprep.subr.bf16.mxu0 0
        %819 = vmatpush2.bf16.msra.mxu0 0
        %820 = vmatprep.subr.bf16.mxu0 0
        %821 = vmatpush2.bf16.msra.mxu0 0
        %822 = vmatprep.subr.bf16.mxu0 0
        %823 = vmatpush2.bf16.msra.mxu0 0
        %824 = vmatprep.subr.bf16.mxu0 0
        %825 = vmatpush2.bf16.msra.mxu0 0
        %826 = vmatprep.subr.bf16.mxu0 0
        %827 = vmatpush2.bf16.msra.mxu0 0
        %828 = vmatprep.subr.bf16.mxu0 0
        %829 = vmatpush2.bf16.msra.mxu0 0
        %830 = vmatprep.subr.bf16.mxu0 0
        %831 = vmatpush2.bf16.msra.mxu0 0
        %832 = vmatprep.subr.bf16.mxu0 0
        %833 = vmatpush2.bf16.msra.mxu0 0
        %834 = vmatprep.mubr.bf16.mxu0 0
        %835 = vmatmul.mubr.bf16.gmra.mxu0 %v696
        %v836 = vpop.f32.mrf.mxu0
        %v837 = vadd.f32 %v541, %v836
        %v838 = vpop.f32.mrf.mxu0
        %v839 = vpop.f32.mrf.mxu0
        %v840 = vadd.f32 %v542, %v839
        %v841 = vpop.f32.mrf.mxu0
        %842 = vdwg.mxu0
        %v843 = vmax.f32 %v796, 0.0
        %v844 = vmax.f32 %v799, 0.0
        %v845 = vmax.f32 %v837, 0.0
        %v846 = vmax.f32 %v840, 0.0
        %v847 = vpack.c.bf16 %v844, %v843
        %v848 = vpack.c.bf16 %v846, %v845
        %v849 = vld [vmem:[#allocation10] sm:$0xf]
        %v850 = vld [vmem:[#allocation10 + $0x4] sm:$0xf]
        %v851 = vld [vmem:[#allocation10 + $0x8] sm:$0xf]
        %v852 = vld [vmem:[#allocation10 + $0xc] sm:$0xf]
        %v853 = vld [vmem:[#allocation10 + $0x10] sm:$0xf]
        %v854 = vld [vmem:[#allocation10 + $0x14] sm:$0xf]
        %v855 = vld [vmem:[#allocation10 + $0x18] sm:$0xf]
        %v856 = vld [vmem:[#allocation10 + $0x1c] sm:$0xf]
        %v857 = vld [vmem:[#allocation10 + $0x20] sm:$0xf]
        %v858 = vld [vmem:[#allocation10 + $0x24] sm:$0xf]
        %v859 = vld [vmem:[#allocation10 + $0x28] sm:$0xf]
        %v860 = vld [vmem:[#allocation10 + $0x2c] sm:$0xf]
        %v861 = vld [vmem:[#allocation10 + $0x30] sm:$0xf]
        %v862 = vld [vmem:[#allocation10 + $0x34] sm:$0xf]
        %v863 = vld [vmem:[#allocation10 + $0x38] sm:$0xf]
        %v864 = vld [vmem:[#allocation10 + $0x3c] sm:$0xf]
        %v881 = vunpack.c.l.b16 %v849
        %v882 = vunpack.c.l.b16 %v850
        %v883 = vunpack.c.l.b16 %v851
        %v884 = vunpack.c.l.b16 %v852
        %v885 = vunpack.c.l.b16 %v853
        %v886 = vunpack.c.l.b16 %v854
        %v887 = vunpack.c.l.b16 %v855
        %v888 = vunpack.c.l.b16 %v856
        %v889 = vunpack.c.l.b16 %v857
        %v890 = vunpack.c.l.b16 %v858
        %v891 = vunpack.c.l.b16 %v859
        %v892 = vunpack.c.l.b16 %v860
        %v893 = vunpack.c.l.b16 %v861
        %v894 = vunpack.c.l.b16 %v862
        %v895 = vunpack.c.l.b16 %v863
        %v896 = vunpack.c.l.b16 %v864
        %v897 = vpack.c.b16 %v882, %v881
        %v898 = vpack.c.b16 %v884, %v883
        %v899 = vpack.c.b16 %v886, %v885
        %v900 = vpack.c.b16 %v888, %v887
        %v901 = vpack.c.b16 %v890, %v889
        %v902 = vpack.c.b16 %v892, %v891
        %v903 = vpack.c.b16 %v894, %v893
        %v904 = vpack.c.b16 %v896, %v895
        %913 = vmatprep.subr.bf16.mxu0 0
        %914 = vmatpush1.bf16.msra.mxu0 %v904
        %915 = vmatprep.subr.bf16.mxu0 0
        %916 = vmatpush1.bf16.msra.mxu0 %v903
        %917 = vmatprep.subr.bf16.mxu0 0
        %918 = vmatpush1.bf16.msra.mxu0 %v902
        %919 = vmatprep.subr.bf16.mxu0 0
        %920 = vmatpush1.bf16.msra.mxu0 %v901
        %921 = vmatprep.subr.bf16.mxu0 0
        %922 = vmatpush1.bf16.msra.mxu0 %v900
        %923 = vmatprep.subr.bf16.mxu0 0
        %924 = vmatpush1.bf16.msra.mxu0 %v899
        %925 = vmatprep.subr.bf16.mxu0 0
        %926 = vmatpush1.bf16.msra.mxu0 %v898
        %927 = vmatprep.subr.bf16.mxu0 0
        %928 = vmatpush1.bf16.msra.mxu0 %v897
        %929 = vmatprep.subr.bf16.mxu0 0
        %930 = vmatpush2.bf16.msra.mxu0 0
        %931 = vmatprep.subr.bf16.mxu0 0
        %932 = vmatpush2.bf16.msra.mxu0 0
        %933 = vmatprep.subr.bf16.mxu0 0
        %934 = vmatpush2.bf16.msra.mxu0 0
        %935 = vmatprep.subr.bf16.mxu0 0
        %936 = vmatpush2.bf16.msra.mxu0 0
        %937 = vmatprep.subr.bf16.mxu0 0
        %938 = vmatpush2.bf16.msra.mxu0 0
        %939 = vmatprep.subr.bf16.mxu0 0
        %940 = vmatpush2.bf16.msra.mxu0 0
        %941 = vmatprep.subr.bf16.mxu0 0
        %942 = vmatpush2.bf16.msra.mxu0 0
        %943 = vmatprep.subr.bf16.mxu0 0
        %944 = vmatpush2.bf16.msra.mxu0 0
        %945 = vmatprep.mubr.bf16.mxu0 0
        %946 = vmatmul.mubr.bf16.gmra.mxu0 %v847
        %v947 = vpop.f32.mrf.mxu0
        %v948 = vadd.f32 0.0, %v947
        %v949 = vpop.f32.mrf.mxu0
        %v950 = vpop.f32.mrf.mxu0
        %v951 = vadd.f32 0.0, %v950
        %v952 = vpop.f32.mrf.mxu0
        %953 = vdwg.mxu0
        %v954 = vsub.f32 0.0, %v948
        %v955 = vsub.f32 0.0, %v951
        %v956 = vmul.f32 %v954, 1.442695
        %v957 = vpow.pop %v956
        %v958 = vmul.f32 %v955, 1.442695
        %v959 = vpow.pop %v958
        %v960 = vadd.f32 %v957, 1.0
        %v961 = vadd.f32 %v959, 1.0
        %v962 = vrcp.pop %v960
        %v963 = vrcp.pop %v961
        %964 = vst [vmem:[%s301] sm:$0xff] %v962
        %965 = vst [vmem:[%s301 + $0x8] sm:$0xff] %v963
        %966 = vmatprep.subr.bf16.mxu0 0
        %967 = vmatpush1.bf16.msra.mxu0 %v904
        %968 = vmatprep.subr.bf16.mxu0 0
        %969 = vmatpush1.bf16.msra.mxu0 %v903
        %970 = vmatprep.subr.bf16.mxu0 0
        %971 = vmatpush1.bf16.msra.mxu0 %v902
        %972 = vmatprep.subr.bf16.mxu0 0
        %973 = vmatpush1.bf16.msra.mxu0 %v901
        %974 = vmatprep.subr.bf16.mxu0 0
        %975 = vmatpush1.bf16.msra.mxu0 %v900
        %976 = vmatprep.subr.bf16.mxu0 0
        %977 = vmatpush1.bf16.msra.mxu0 %v899
        %978 = vmatprep.subr.bf16.mxu0 0
        %979 = vmatpush1.bf16.msra.mxu0 %v898
        %980 = vmatprep.subr.bf16.mxu0 0
        %981 = vmatpush1.bf16.msra.mxu0 %v897
        %982 = vmatprep.subr.bf16.mxu0 0
        %983 = vmatpush2.bf16.msra.mxu0 0
        %984 = vmatprep.subr.bf16.mxu0 0
        %985 = vmatpush2.bf16.msra.mxu0 0
        %986 = vmatprep.subr.bf16.mxu0 0
        %987 = vmatpush2.bf16.msra.mxu0 0
        %988 = vmatprep.subr.bf16.mxu0 0
        %989 = vmatpush2.bf16.msra.mxu0 0
        %990 = vmatprep.subr.bf16.mxu0 0
        %991 = vmatpush2.bf16.msra.mxu0 0
        %992 = vmatprep.subr.bf16.mxu0 0
        %993 = vmatpush2.bf16.msra.mxu0 0
        %994 = vmatprep.subr.bf16.mxu0 0
        %995 = vmatpush2.bf16.msra.mxu0 0
        %996 = vmatprep.subr.bf16.mxu0 0
        %997 = vmatpush2.bf16.msra.mxu0 0
        %998 = vmatprep.mubr.bf16.mxu0 0
        %999 = vmatmul.mubr.bf16.gmra.mxu0 %v848
        %v1000 = vpop.f32.mrf.mxu0
        %v1001 = vadd.f32 0.0, %v1000
        %v1002 = vpop.f32.mrf.mxu0
        %v1003 = vpop.f32.mrf.mxu0
        %v1004 = vadd.f32 0.0, %v1003
        %v1005 = vpop.f32.mrf.mxu0
        %1006 = vdwg.mxu0
        %v1007 = vsub.f32 0.0, %v1001
        %v1008 = vsub.f32 0.0, %v1004
        %v1009 = vmul.f32 %v1007, 1.442695
        %v1010 = vpow.pop %v1009
        %v1011 = vmul.f32 %v1008, 1.442695
        %v1012 = vpow.pop %v1011
        %v1013 = vadd.f32 %v1010, 1.0
        %v1014 = vadd.f32 %v1012, 1.0
        %v1015 = vrcp.pop %v1013
        %v1016 = vrcp.pop %v1014
        %1017 = vst [vmem:[%s301 + $0x10] sm:$0xff] %v1015
        %1018 = vst [vmem:[%s301 + $0x18] sm:$0xff] %v1016
        %s1019 = sand.u32 %s142, 1
        %s1020 = scalar_lea.sflag [#allocation4], %s1019
        %s1021 = sand.u32 %s142, 1
        %s1022 = smul.addr %s1021, 32
        %s1023 = scalar_lea.vmem [#allocation11], %s1022
        // Predicated region
        $region61: #{tpu_custom_call.1} parent=39 // pred_check
          %p1024 = pneg %p152
        $region62: #{tpu_custom_call.1} parent=39 // pred_check_branch
          %1026 = sbr.rel (%p1024) target = $region64
        $region63: #{tpu_custom_call.1} parent=39 // pred_region
          %s1027 = smul.u32 4, %s24
          %s1029 = ssub.s32 512, 512
          %1030 = vsyncadd %s1020, %s1029
          %s1031 = smul.addr %s1027, 128
          %s1032 = scalar_lea.hbm %s5, %s1031
          %s1033 = sshll.u32 %s1023, 4
          %s1034 = int_to_ptr.vmem [resolvable:$true] %s1033
          %1039 = dma.vmem_to_hbm [thread:$0]  %s1034, 512, %s1032, %s1020, 128, 128, 8
        $region64: #{tpu_custom_call.1} parent=39 // pred_fallthru
          _
      $region40: #{tpu_custom_call.1} parent=5 // pred_fallthru
        _
      %p1040 = scmp.le.s32.totalorder 2, %s19
      // Predicated region
      $region65: #{tpu_custom_call.1} parent=5 // pred_check
        %p1041 = pneg %p1040
      $region66: #{tpu_custom_call.1} parent=5 // pred_check_branch
        %1043 = sbr.rel (%p1041) target = $region68
      $region67: #{tpu_custom_call.1} parent=5 // pred_region
        %s1044 = ssub.s32 %s19, 2
        // Predicated region
        $region69: #{tpu_custom_call.1} parent=67 // pred_check
          %p1045 = pneg %p158
        $region70: #{tpu_custom_call.1} parent=67 // pred_check_branch
          %1047 = sbr.rel (%p1045) target = $region72
        $region71: #{tpu_custom_call.1} parent=67 // pred_region
          %s1048 = sand.u32 %s143, 1
          %s1049 = scalar_lea.sflag [#allocation4], %s1048
          %s1050 = sand.u32 %s143, 1
          %s1051 = smul.addr %s1050, 32
          %s1052 = scalar_lea.vmem [#allocation11], %s1051
          %1053 = dma.done %s1049, 512
        $region72: #{tpu_custom_call.1} parent=67 // pred_fallthru
          _
      $region68: #{tpu_custom_call.1} parent=5 // pred_fallthru
        _
    $region6: #{tpu_custom_call.1} parent=1 // loop_footer
      %s23 = sadd.s32 1, %s19
    $region7: #{tpu_custom_call.1} parent=1 // loop_footer_branch
      %18 = sbr.rel target = $region3
    $region8: #{tpu_custom_call.1} parent=1 // loop_exit
      _
    %1054 = vsyncpa [#allocation3], 1
    %s1055 = scalar_lea.sflag [#allocation3], 1
    %1056 = vsyncpa %s1055, 1
    %1057 = vsyncpa [#allocation6], 1
    %1058 = vsyncpa [#allocation9], 1
    %1059 = vsyncpa [#allocation4], 1
    %s1060 = scalar_lea.sflag [#allocation4], 1
    %1061 = vsyncpa %s1060, 1

</llo_original>
